<compile_context>
chip_gen: v7x
topology: tpu7x:2x2x1
jax: 0.10.0
libtpu: 0.0.40
codegen_flags: <defaults>
</compile_context>

<pallas_src>
import jax
import jax.numpy as jnp
from jax import lax
from jax.experimental import pallas as pl
from jax.experimental.pallas import tpu as pltpu


def _round_up(x, m):
    return ((x + m - 1) // m) * m


def _fc_k_tiling(k):
    """Pick a 128-aligned fc1 K tile (<= 2048) and the padded K it implies."""
    tk = min(2048, _round_up(k, 128))
    kp = _round_up(k, tk)
    return kp, tk


# ---------------------------------------------------------------------------
# Pallas kernels
# ---------------------------------------------------------------------------

def _conv_relu_pool_kernel(x_ref, w_ref, b_ref, o_ref):
    """Fused 3x3 SAME conv + 2x2 max-pool + bias + ReLU for one sample.

    x_ref: (1, 4, Hp, Kp)   bf16 -- slot j holds padded rows j, j+2, ...
                                    (Hp = Ho padded to 16, Kp = (W+2)*Cin
                                     padded to a multiple of 128).
    w_ref: (3, Kp, W*Cout)  bf16 -- banded conv matrix per dy tap; output
                                    columns ordered [even w | odd w] so the
                                    width pool is a lane half-split.
    b_ref: (1, (W//2)*Cout) f32  -- bias tiled across the pooled width.
    o_ref: (1, Hp, (W//2)*Cout)
    """
    _, _, hp, kp = x_ref.shape
    xall = x_ref[0]                                      # (4, Hp, Kp)
    acc = None
    for dy in range(3):
        # rows [0:Hp] = even conv rows' tap, rows [Hp:2Hp] = odd conv rows' tap
        xt = xall[dy:dy + 2].reshape(2 * hp, kp)         # free view (Hp % 16 == 0)
        z = jnp.dot(xt, w_ref[dy], preferred_element_type=jnp.float32)
        acc = z if acc is None else acc + z
    # 2x2 pool first (max commutes with the monotone bias+ReLU epilogue):
    m = jnp.maximum(acc[:hp], acc[hp:])                  # row pool (even vs odd)
    half = o_ref.shape[-1]
    pooled = jnp.maximum(m[:, :half], m[:, half:])       # width pool (half split)
    o_ref[0] = jnp.maximum(pooled + b_ref[...], 0.0).astype(o_ref.dtype)


def conv3x3_relu_pool(xrows, wbd, brow_half, *, out_dtype=jnp.bfloat16):
    """xrows: (N, 4, Hp, Kp); wbd: (3, Kp, W*Cout); brow_half: (1, (W//2)*Cout)."""
    n_batch, _, hp, kp = xrows.shape
    _, kp_w, wcout = wbd.shape
    half = wcout // 2
    assert kp_w == kp, (kp_w, kp)
    assert brow_half.shape[1] == half, (brow_half.shape, half)
    return pl.pallas_call(
        _conv_relu_pool_kernel,
        out_shape=jax.ShapeDtypeStruct((n_batch, hp, half), out_dtype),
        grid=(n_batch,),
        in_specs=[
            pl.BlockSpec((1, 4, hp, kp), lambda i: (i, 0, 0, 0)),
            pl.BlockSpec((3, kp, wcout), lambda i: (0, 0, 0)),
            pl.BlockSpec((1, half), lambda i: (0, 0)),
        ],
        out_specs=pl.BlockSpec((1, hp, half), lambda i: (i, 0, 0)),
        compiler_params=pltpu.CompilerParams(dimension_semantics=("parallel",)),
    )(xrows, wbd, brow_half)


def _fc_fused_kernel(x_ref, w1_ref, b1_ref, w2_ref, b2_ref, o_ref, acc_ref):
    """K-tiled fc1 (+bias+ReLU) fused with fc2 in the finalize branch."""
    k = pl.program_id(0)

    @pl.when(k == 0)
    def _():
        acc_ref[...] = jnp.zeros_like(acc_ref)

    acc_ref[...] += jnp.dot(x_ref[...], w1_ref[...],
                            preferred_element_type=jnp.float32)

    @pl.when(k == pl.num_programs(0) - 1)
    def _():
        h = jnp.maximum(acc_ref[...] + b1_ref[...], 0.0)          # (M, N1) f32
        out = jnp.dot(h.astype(jnp.bfloat16), w2_ref[...],
                      preferred_element_type=jnp.float32)         # (M, N2pad)
        o_ref[...] = (out + b2_ref[...]).astype(o_ref.dtype)


def fc1_relu_fc2(x, w1, b1, w2, b2):
    """x:(M,K) bf16, w1:(Kp,N1) bf16 (K already padded), b1:(N1,) f32,
    w2:(N1,N2) bf16, b2:(N2,) f32. Returns (M, N2) f32."""
    m_dim, k_dim = x.shape
    kp, tk = _fc_k_tiling(k_dim)
    n1 = w1.shape[1]
    n2 = w2.shape[1]
    n2p = _round_up(n2, 128)          # lane-dense output, slice outside
    assert w1.shape[0] == kp, (w1.shape, kp)

    xpad = jnp.pad(x, ((0, 0), (0, kp - k_dim)))
    w2p = jnp.pad(w2, ((0, 0), (0, n2p - n2)))
    b2p = jnp.pad(b2, (0, n2p - n2)).reshape(1, n2p)

    out = pl.pallas_call(
        _fc_fused_kernel,
        out_shape=jax.ShapeDtypeStruct((m_dim, n2p), jnp.float32),
        grid=(kp // tk,),
        in_specs=[
            pl.BlockSpec((m_dim, tk), lambda kk: (0, kk)),
            pl.BlockSpec((tk, n1), lambda kk: (kk, 0)),
            pl.BlockSpec((1, n1), lambda kk: (0, 0)),
            pl.BlockSpec((n1, n2p), lambda kk: (0, 0)),
            pl.BlockSpec((1, n2p), lambda kk: (0, 0)),
        ],
        out_specs=pl.BlockSpec((m_dim, n2p), lambda kk: (0, 0)),
        scratch_shapes=[pltpu.VMEM((m_dim, n1), jnp.float32)],
        compiler_params=pltpu.CompilerParams(dimension_semantics=("arbitrary",)),
    )(xpad, w1, b1.reshape(1, n1), w2p, b2p)
    return out[:, :n2]


# ---------------------------------------------------------------------------
# One-time parameter preparation (hoisted OUT of the jitted forward)
# ---------------------------------------------------------------------------

def _build_banded_conv_weights(w_oihw, w_padded, k_pad):
    """(O, Cin, 3, 3) OIHW -> (3, k_pad, Win*O) banded matrices (one per dy tap).

    Row index = wp*Cin + c (padded-width-major input layout), zero-padded to
    k_pad rows.  Columns are permuted [even w | odd w] so the 2x2 width pool
    is a lane half-split and the pooled layout is w'*O + o.
    """
    o_ch, cin, kh, kw = w_oihw.shape
    win = w_padded - 2
    p = jnp.arange(w_padded)[:, None]
    w = jnp.arange(win)[None, :]
    perm = jnp.concatenate([jnp.arange(0, win, 2), jnp.arange(1, win, 2)])
    mats = []
    for dy in range(kh):
        m = jnp.zeros((w_padded, cin, win, o_ch), jnp.float32)
        for dx in range(kw):
            sel = (p == w + dx).astype(jnp.float32)                  # (Wp, Win)
            m = m + sel[:, None, :, None] * w_oihw[:, :, dy, dx].T[None, :, None, :]
        m = m[:, :, perm, :]                                         # even w | odd w
        m = m.reshape(w_padded * cin, win * o_ch)
        m = jnp.pad(m, ((0, k_pad - w_padded * cin), (0, 0)))        # K alignment
        mats.append(m)
    return jnp.stack(mats, axis=0)


def prepare_params(params, input_hw):
    """Build banded/permuted/padded kernel parameters once (cacheable)."""
    w1, b1, w2, b2, fw1, fb1, fw2, fb2 = params
    h, w = input_hw
    c1, cin = w1.shape[0], w1.shape[1]
    c2 = w2.shape[0]
    ho1, wo1 = h // 2, w // 2
    ho2, wo2 = h // 4, w // 4

    kpad1 = _round_up((w + 2) * cin, 128)
    kpad2 = _round_up((wo1 + 2) * c1, 128)
    wbd1 = _build_banded_conv_weights(w1, w + 2, kpad1).astype(jnp.bfloat16)
    wbd2 = _build_banded_conv_weights(w2, wo1 + 2, kpad2).astype(jnp.bfloat16)
    brow1 = jnp.tile(b1, wo1).reshape(1, wo1 * c1).astype(jnp.float32)
    brow2 = jnp.tile(b2, wo2).reshape(1, wo2 * c2).astype(jnp.float32)

    # Fold the torch NCHW-flatten permutation into fc1's weight columns so the
    # pooled (h, w*c) activation is consumed directly (no runtime transpose).
    h_i, w_i, o_i = jnp.meshgrid(jnp.arange(ho2), jnp.arange(wo2), jnp.arange(c2),
                                 indexing="ij")
    torch_cols = (o_i * (ho2 * wo2) + h_i * wo2 + w_i).reshape(-1)
    fw1_r = fw1[:, torch_cols].T                                     # (K, N1)
    k_fc = ho2 * wo2 * c2
    kp, _ = _fc_k_tiling(k_fc)
    fw1_r = jnp.pad(fw1_r, ((0, kp - k_fc), (0, 0))).astype(jnp.bfloat16)
    fw2_r = fw2.T.astype(jnp.bfloat16)                               # (N1, N2)

    return (wbd1, brow1, wbd2, brow2, fw1_r,
            fb1.astype(jnp.float32), fw2_r, fb2.astype(jnp.float32))


# ---------------------------------------------------------------------------
# Activation packing (small XLA glue between the fused kernels)
# ---------------------------------------------------------------------------

def _pack_rows(x2d, cin, k_pad, ho_pad):
    """(N, H, W*cin) -> (N, 4, ho_pad, k_pad) parity-packed, SAME-padded rows.

    Zero-pads 1 row top/bottom (+ extra bottom rows so each parity slot has
    ho_pad rows) and `cin` zero columns left / up to k_pad right, then packs
    slot j = padded rows j, j+2, ... so the kernel's even/odd conv-row matmul
    needs no strided loads.
    """
    # TODO(synk): fuse this repack into the producing conv kernel's epilogue
    # at the real module size to save an HBM round-trip of the activation.
    _, h, wc = x2d.shape
    ho = h // 2
    xp = jnp.pad(x2d, ((0, 0),
                       (1, 1 + 2 * (ho_pad - ho)),
                       (cin, k_pad - wc - cin)))
    slots = [xp[:, j:j + 2 * ho_pad:2, :] for j in range(4)]
    return jnp.stack(slots, axis=1)


# ---------------------------------------------------------------------------
# Full model forward (jitted): layout glue + 3 pallas_calls
# ---------------------------------------------------------------------------

def genre_classifier_forward(x_nchw, prepped):
    wbd1, brow1, wbd2, brow2, fw1_r, fb1, fw2_r, fb2 = prepped
    n, cin, h, w = x_nchw.shape
    ho1, wo1 = h // 2, w // 2
    ho2, wo2 = h // 4, w // 4
    c1 = brow1.shape[1] // wo1
    c2 = brow2.shape[1] // wo2
    kpad1 = wbd1.shape[1]
    kpad2 = wbd2.shape[1]
    hp1 = _round_up(ho1, 16)     # bf16 sublane tile
    hp2 = _round_up(ho2, 16)

    x = jnp.transpose(x_nchw, (0, 2, 3, 1)).reshape(n, h, w * cin)
    xr1 = _pack_rows(x.astype(jnp.bfloat16), cin, kpad1, hp1)
    p1 = conv3x3_relu_pool(xr1, wbd1, brow1)                 # (N, hp1, wo1*c1)
    xr2 = _pack_rows(p1[:, :ho1, :], c1, kpad2, hp2)
    p2 = conv3x3_relu_pool(xr2, wbd2, brow2)                 # (N, hp2, wo2*c2)
    flat = p2[:, :ho2, :].reshape(n, ho2 * wo2 * c2)         # fc1-ready layout
    return fc1_relu_fc2(flat, fw1_r, fb1, fw2_r, fb2)


# ---------------------------------------------------------------------------
# Pure-JAX f32 reference (sanity check)
# ---------------------------------------------------------------------------

def reference_forward(x_nchw, params):
    w1, b1, w2, b2, fw1, fb1, fw2, fb2 = params

    def conv(x, w, b):
        y = lax.conv_general_dilated(
            x, w, window_strides=(1, 1), padding="SAME",
            dimension_numbers=("NCHW", "OIHW", "NCHW"))
        return jnp.maximum(y + b[None, :, None, None], 0.0)

    def pool(x):
        return lax.reduce_window(x, -jnp.inf, lax.max,
                                 (1, 1, 2, 2), (1, 1, 2, 2), "VALID")

    x = pool(conv(x_nchw, w1, b1))
    x = pool(conv(x, w2, b2))
    x = x.reshape(x.shape[0], -1)
    x = jnp.maximum(x @ fw1.T + fb1, 0.0)
    return x @ fw2.T + fb2


if __name__ == "__main__":
    # Small shapes consistent with the module structure (real module: 216x144).
    N, C_IN, H, W = 2, 3, 16, 16
    C1, C2 = 16, 32
    FC1_IN = C2 * (H // 4) * (W // 4)     # 512 here (62208 in the original module)
    FC1_OUT, NUM_CLASSES = 128, 10

    key = jax.random.PRNGKey(0)
    ks = jax.random.split(key, 9)
    f32 = jnp.float32
    w1 = 0.05 * jax.random.normal(ks[0], (C1, C_IN, 3, 3), f32)
    b1 = 0.05 * jax.random.normal(ks[1], (C1,), f32)
    w2 = 0.05 * jax.random.normal(ks[2], (C2, C1, 3, 3), f32)
    b2 = 0.05 * jax.random.normal(ks[3], (C2,), f32)
    fw1 = 0.05 * jax.random.normal(ks[4], (FC1_OUT, FC1_IN), f32)
    fb1 = 0.05 * jax.random.normal(ks[5], (FC1_OUT,), f32)
    fw2 = 0.05 * jax.random.normal(ks[6], (NUM_CLASSES, FC1_OUT), f32)
    fb2 = 0.05 * jax.random.normal(ks[7], (NUM_CLASSES,), f32)
    params = (w1, b1, w2, b2, fw1, fb1, fw2, fb2)

    x = jax.random.normal(ks[8], (N, C_IN, H, W), f32)

    prepped = prepare_params(params, (H, W))          # one-time, outside jit
    fwd = jax.jit(genre_classifier_forward)
    out = jax.block_until_ready(fwd(x, prepped))
    ref = jax.block_until_ready(jax.jit(reference_forward)(x, params))

    assert out.shape == (N, NUM_CLASSES), out.shape
    # bf16 MXU operands vs f32 reference -> loosened tolerance.
    max_err = float(jnp.max(jnp.abs(out - ref)))
    assert max_err < 4e-2, f"mismatch vs reference, max abs err = {max_err}"
    print("KERNEL_OK")
</pallas_src>

<mosaic_0001>
module attributes {stable_mosaic.version = 11 : i64} {
  func.func @_conv_relu_pool_kernel(%arg0: i32, %arg1: memref<1x4x16x256xbf16, #tpu.memory_space<vmem>>, %arg2: memref<3x256x256xbf16, #tpu.memory_space<vmem>>, %arg3: memref<1x128xf32, #tpu.memory_space<vmem>>, %arg4: memref<1x16x128xbf16, #tpu.memory_space<vmem>>) attributes {dimension_semantics = [#tpu.dimension_semantics<parallel>], iteration_bounds = array<i64: 2>, scalar_prefetch = 0 : i64, scratch_operands = 0 : i64, tpu.core_type = #tpu.core_type<tc>, window_params = [{transform_indices = @transform_0, window_bounds = array<i64: 1, 4, 16, 256>}, {pipeline_mode = #tpu.pipeline_mode<synchronous>, transform_indices = @transform_1, window_bounds = array<i64: 3, 256, 256>}, {pipeline_mode = #tpu.pipeline_mode<synchronous>, transform_indices = @transform_2, window_bounds = array<i64: 1, 128>}, {transform_indices = @transform_3, window_bounds = array<i64: 1, 16, 128>}]} {
    %c0 = arith.constant 0 : index
    %c0_0 = arith.constant 0 : index
    %c0_1 = arith.constant 0 : index
    %c0_2 = arith.constant 0 : index
    %0 = vector.load %arg1[%c0, %c0_0, %c0_1, %c0_2] : memref<1x4x16x256xbf16, #tpu.memory_space<vmem>>, vector<1x4x16x256xbf16>
    %1 = vector.shape_cast %0 : vector<1x4x16x256xbf16> to vector<4x16x256xbf16>
    %2 = vector.extract_strided_slice %1 {offsets = [0, 0, 0], sizes = [2, 16, 256], strides = [1, 1, 1]} : vector<4x16x256xbf16> to vector<2x16x256xbf16>
    %3 = vector.shape_cast %2 : vector<2x16x256xbf16> to vector<32x256xbf16>
    %c0_3 = arith.constant 0 : index
    %c0_4 = arith.constant 0 : index
    %c0_5 = arith.constant 0 : index
    %4 = vector.load %arg2[%c0_3, %c0_4, %c0_5] : memref<3x256x256xbf16, #tpu.memory_space<vmem>>, vector<1x256x256xbf16>
    %5 = vector.shape_cast %4 : vector<1x256x256xbf16> to vector<256x256xbf16>
    %cst = arith.constant dense<0.000000e+00> : vector<32x256xf32>
    %6 = tpu.matmul %3, %5, %cst {dimension_numbers = #tpu.dot_dimension_numbers<[1], [0], [0], [1], [0, 0, 1, 1], [], []>} : vector<32x256xbf16>, vector<256x256xbf16>, vector<32x256xf32> -> vector<32x256xf32>
    %7 = vector.extract_strided_slice %1 {offsets = [1, 0, 0], sizes = [2, 16, 256], strides = [1, 1, 1]} : vector<4x16x256xbf16> to vector<2x16x256xbf16>
    %8 = vector.shape_cast %7 : vector<2x16x256xbf16> to vector<32x256xbf16>
    %c1 = arith.constant 1 : index
    %c0_6 = arith.constant 0 : index
    %c0_7 = arith.constant 0 : index
    %9 = vector.load %arg2[%c1, %c0_6, %c0_7] : memref<3x256x256xbf16, #tpu.memory_space<vmem>>, vector<1x256x256xbf16>
    %10 = vector.shape_cast %9 : vector<1x256x256xbf16> to vector<256x256xbf16>
    %cst_8 = arith.constant dense<0.000000e+00> : vector<32x256xf32>
    %11 = tpu.matmul %8, %10, %cst_8 {dimension_numbers = #tpu.dot_dimension_numbers<[1], [0], [0], [1], [0, 0, 1, 1], [], []>} : vector<32x256xbf16>, vector<256x256xbf16>, vector<32x256xf32> -> vector<32x256xf32>
    %12 = arith.addf %6, %11 : vector<32x256xf32>
    %13 = vector.extract_strided_slice %1 {offsets = [2, 0, 0], sizes = [2, 16, 256], strides = [1, 1, 1]} : vector<4x16x256xbf16> to vector<2x16x256xbf16>
    %14 = vector.shape_cast %13 : vector<2x16x256xbf16> to vector<32x256xbf16>
    %c2 = arith.constant 2 : index
    %c0_9 = arith.constant 0 : index
    %c0_10 = arith.constant 0 : index
    %15 = vector.load %arg2[%c2, %c0_9, %c0_10] : memref<3x256x256xbf16, #tpu.memory_space<vmem>>, vector<1x256x256xbf16>
    %16 = vector.shape_cast %15 : vector<1x256x256xbf16> to vector<256x256xbf16>
    %cst_11 = arith.constant dense<0.000000e+00> : vector<32x256xf32>
    %17 = tpu.matmul %14, %16, %cst_11 {dimension_numbers = #tpu.dot_dimension_numbers<[1], [0], [0], [1], [0, 0, 1, 1], [], []>} : vector<32x256xbf16>, vector<256x256xbf16>, vector<32x256xf32> -> vector<32x256xf32>
    %18 = arith.addf %12, %17 : vector<32x256xf32>
    %19 = vector.extract_strided_slice %18 {offsets = [0, 0], sizes = [16, 256], strides = [1, 1]} : vector<32x256xf32> to vector<16x256xf32>
    %20 = vector.extract_strided_slice %18 {offsets = [16, 0], sizes = [16, 256], strides = [1, 1]} : vector<32x256xf32> to vector<16x256xf32>
    %21 = arith.maximumf %19, %20 : vector<16x256xf32>
    %22 = vector.extract_strided_slice %21 {offsets = [0, 0], sizes = [16, 128], strides = [1, 1]} : vector<16x256xf32> to vector<16x128xf32>
    %23 = vector.extract_strided_slice %21 {offsets = [0, 128], sizes = [16, 128], strides = [1, 1]} : vector<16x256xf32> to vector<16x128xf32>
    %24 = arith.maximumf %22, %23 : vector<16x128xf32>
    %c0_12 = arith.constant 0 : index
    %c0_13 = arith.constant 0 : index
    %25 = vector.load %arg3[%c0_12, %c0_13] : memref<1x128xf32, #tpu.memory_space<vmem>>, vector<1x128xf32>
    %26 = vector.broadcast %25 : vector<1x128xf32> to vector<16x128xf32>
    %27 = arith.addf %24, %26 : vector<16x128xf32>
    %cst_14 = arith.constant 0.000000e+00 : f32
    %28 = vector.broadcast %cst_14 : f32 to vector<16x128xf32>
    %29 = arith.maximumf %27, %28 : vector<16x128xf32>
    %30 = arith.truncf %29 : vector<16x128xf32> to vector<16x128xbf16>
    %c0_15 = arith.constant 0 : index
    %c0_16 = arith.constant 0 : index
    %c0_17 = arith.constant 0 : index
    %31 = vector.load %arg4[%c0_15, %c0_16, %c0_17] : memref<1x16x128xbf16, #tpu.memory_space<vmem>>, vector<1x16x128xbf16>
    %32 = vector.shape_cast %31 : vector<1x16x128xbf16> to vector<16x128xbf16>
    %33 = vector.shape_cast %30 : vector<16x128xbf16> to vector<1x16x128xbf16>
    tpu.vector_store %arg4[%c0_15, %c0_16, %c0_17], %33 {strides = array<i32>} : memref<1x16x128xbf16, #tpu.memory_space<vmem>>, vector<1x16x128xbf16>,
    return
  }
  func.func @transform_0(%arg0: i32) -> (i32, i32, i32, i32) {
    %c0_i32 = arith.constant 0 : i32
    %c0_i32_0 = arith.constant 0 : i32
    %c0_i32_1 = arith.constant 0 : i32
    %c0_i32_2 = arith.constant 0 : i32
    return %arg0, %c0_i32, %c0_i32_0, %c0_i32_1 : i32, i32, i32, i32
  }
  func.func @transform_1(%arg0: i32) -> (i32, i32, i32) {
    %c0_i32 = arith.constant 0 : i32
    %c0_i32_0 = arith.constant 0 : i32
    %c0_i32_1 = arith.constant 0 : i32
    %c0_i32_2 = arith.constant 0 : i32
    return %c0_i32, %c0_i32_0, %c0_i32_1 : i32, i32, i32
  }
  func.func @transform_2(%arg0: i32) -> (i32, i32) {
    %c0_i32 = arith.constant 0 : i32
    %c0_i32_0 = arith.constant 0 : i32
    %c0_i32_1 = arith.constant 0 : i32
    return %c0_i32, %c0_i32_0 : i32, i32
  }
  func.func @transform_3(%arg0: i32) -> (i32, i32, i32) {
    %c0_i32 = arith.constant 0 : i32
    %c0_i32_0 = arith.constant 0 : i32
    %c0_i32_1 = arith.constant 0 : i32
    return %arg0, %c0_i32, %c0_i32_0 : i32, i32, i32
  }
}

module attributes {stable_mosaic.version = 11 : i64} {
  func.func @_conv_relu_pool_kernel(%arg0: i32, %arg1: memref<1x4x16x128xbf16, #tpu.memory_space<vmem>>, %arg2: memref<3x128x256xbf16, #tpu.memory_space<vmem>>, %arg3: memref<1x128xf32, #tpu.memory_space<vmem>>, %arg4: memref<1x16x128xbf16, #tpu.memory_space<vmem>>) attributes {dimension_semantics = [#tpu.dimension_semantics<parallel>], iteration_bounds = array<i64: 2>, scalar_prefetch = 0 : i64, scratch_operands = 0 : i64, tpu.core_type = #tpu.core_type<tc>, window_params = [{transform_indices = @transform_0, window_bounds = array<i64: 1, 4, 16, 128>}, {pipeline_mode = #tpu.pipeline_mode<synchronous>, transform_indices = @transform_1, window_bounds = array<i64: 3, 128, 256>}, {pipeline_mode = #tpu.pipeline_mode<synchronous>, transform_indices = @transform_2, window_bounds = array<i64: 1, 128>}, {transform_indices = @transform_3, window_bounds = array<i64: 1, 16, 128>}]} {
    %c0 = arith.constant 0 : index
    %c0_0 = arith.constant 0 : index
    %c0_1 = arith.constant 0 : index
    %c0_2 = arith.constant 0 : index
    %0 = vector.load %arg1[%c0, %c0_0, %c0_1, %c0_2] : memref<1x4x16x128xbf16, #tpu.memory_space<vmem>>, vector<1x4x16x128xbf16>
    %1 = vector.shape_cast %0 : vector<1x4x16x128xbf16> to vector<4x16x128xbf16>
    %2 = vector.extract_strided_slice %1 {offsets = [0, 0, 0], sizes = [2, 16, 128], strides = [1, 1, 1]} : vector<4x16x128xbf16> to vector<2x16x128xbf16>
    %3 = vector.shape_cast %2 : vector<2x16x128xbf16> to vector<32x128xbf16>
    %c0_3 = arith.constant 0 : index
    %c0_4 = arith.constant 0 : index
    %c0_5 = arith.constant 0 : index
    %4 = vector.load %arg2[%c0_3, %c0_4, %c0_5] : memref<3x128x256xbf16, #tpu.memory_space<vmem>>, vector<1x128x256xbf16>
    %5 = vector.shape_cast %4 : vector<1x128x256xbf16> to vector<128x256xbf16>
    %cst = arith.constant dense<0.000000e+00> : vector<32x256xf32>
    %6 = tpu.matmul %3, %5, %cst {dimension_numbers = #tpu.dot_dimension_numbers<[1], [0], [0], [1], [0, 0, 1, 1], [], []>} : vector<32x128xbf16>, vector<128x256xbf16>, vector<32x256xf32> -> vector<32x256xf32>
    %7 = vector.extract_strided_slice %1 {offsets = [1, 0, 0], sizes = [2, 16, 128], strides = [1, 1, 1]} : vector<4x16x128xbf16> to vector<2x16x128xbf16>
    %8 = vector.shape_cast %7 : vector<2x16x128xbf16> to vector<32x128xbf16>
    %c1 = arith.constant 1 : index
    %c0_6 = arith.constant 0 : index
    %c0_7 = arith.constant 0 : index
    %9 = vector.load %arg2[%c1, %c0_6, %c0_7] : memref<3x128x256xbf16, #tpu.memory_space<vmem>>, vector<1x128x256xbf16>
    %10 = vector.shape_cast %9 : vector<1x128x256xbf16> to vector<128x256xbf16>
    %cst_8 = arith.constant dense<0.000000e+00> : vector<32x256xf32>
    %11 = tpu.matmul %8, %10, %cst_8 {dimension_numbers = #tpu.dot_dimension_numbers<[1], [0], [0], [1], [0, 0, 1, 1], [], []>} : vector<32x128xbf16>, vector<128x256xbf16>, vector<32x256xf32> -> vector<32x256xf32>
    %12 = arith.addf %6, %11 : vector<32x256xf32>
    %13 = vector.extract_strided_slice %1 {offsets = [2, 0, 0], sizes = [2, 16, 128], strides = [1, 1, 1]} : vector<4x16x128xbf16> to vector<2x16x128xbf16>
    %14 = vector.shape_cast %13 : vector<2x16x128xbf16> to vector<32x128xbf16>
    %c2 = arith.constant 2 : index
    %c0_9 = arith.constant 0 : index
    %c0_10 = arith.constant 0 : index
    %15 = vector.load %arg2[%c2, %c0_9, %c0_10] : memref<3x128x256xbf16, #tpu.memory_space<vmem>>, vector<1x128x256xbf16>
    %16 = vector.shape_cast %15 : vector<1x128x256xbf16> to vector<128x256xbf16>
    %cst_11 = arith.constant dense<0.000000e+00> : vector<32x256xf32>
    %17 = tpu.matmul %14, %16, %cst_11 {dimension_numbers = #tpu.dot_dimension_numbers<[1], [0], [0], [1], [0, 0, 1, 1], [], []>} : vector<32x128xbf16>, vector<128x256xbf16>, vector<32x256xf32> -> vector<32x256xf32>
    %18 = arith.addf %12, %17 : vector<32x256xf32>
    %19 = vector.extract_strided_slice %18 {offsets = [0, 0], sizes = [16, 256], strides = [1, 1]} : vector<32x256xf32> to vector<16x256xf32>
    %20 = vector.extract_strided_slice %18 {offsets = [16, 0], sizes = [16, 256], strides = [1, 1]} : vector<32x256xf32> to vector<16x256xf32>
    %21 = arith.maximumf %19, %20 : vector<16x256xf32>
    %22 = vector.extract_strided_slice %21 {offsets = [0, 0], sizes = [16, 128], strides = [1, 1]} : vector<16x256xf32> to vector<16x128xf32>
    %23 = vector.extract_strided_slice %21 {offsets = [0, 128], sizes = [16, 128], strides = [1, 1]} : vector<16x256xf32> to vector<16x128xf32>
    %24 = arith.maximumf %22, %23 : vector<16x128xf32>
    %c0_12 = arith.constant 0 : index
    %c0_13 = arith.constant 0 : index
    %25 = vector.load %arg3[%c0_12, %c0_13] : memref<1x128xf32, #tpu.memory_space<vmem>>, vector<1x128xf32>
    %26 = vector.broadcast %25 : vector<1x128xf32> to vector<16x128xf32>
    %27 = arith.addf %24, %26 : vector<16x128xf32>
    %cst_14 = arith.constant 0.000000e+00 : f32
    %28 = vector.broadcast %cst_14 : f32 to vector<16x128xf32>
    %29 = arith.maximumf %27, %28 : vector<16x128xf32>
    %30 = arith.truncf %29 : vector<16x128xf32> to vector<16x128xbf16>
    %c0_15 = arith.constant 0 : index
    %c0_16 = arith.constant 0 : index
    %c0_17 = arith.constant 0 : index
    %31 = vector.load %arg4[%c0_15, %c0_16, %c0_17] : memref<1x16x128xbf16, #tpu.memory_space<vmem>>, vector<1x16x128xbf16>
    %32 = vector.shape_cast %31 : vector<1x16x128xbf16> to vector<16x128xbf16>
    %33 = vector.shape_cast %30 : vector<16x128xbf16> to vector<1x16x128xbf16>
    tpu.vector_store %arg4[%c0_15, %c0_16, %c0_17], %33 {strides = array<i32>} : memref<1x16x128xbf16, #tpu.memory_space<vmem>>, vector<1x16x128xbf16>,
    return
  }
  func.func @transform_0(%arg0: i32) -> (i32, i32, i32, i32) {
    %c0_i32 = arith.constant 0 : i32
    %c0_i32_0 = arith.constant 0 : i32
    %c0_i32_1 = arith.constant 0 : i32
    %c0_i32_2 = arith.constant 0 : i32
    return %arg0, %c0_i32, %c0_i32_0, %c0_i32_1 : i32, i32, i32, i32
  }
  func.func @transform_1(%arg0: i32) -> (i32, i32, i32) {
    %c0_i32 = arith.constant 0 : i32
    %c0_i32_0 = arith.constant 0 : i32
    %c0_i32_1 = arith.constant 0 : i32
    %c0_i32_2 = arith.constant 0 : i32
    return %c0_i32, %c0_i32_0, %c0_i32_1 : i32, i32, i32
  }
  func.func @transform_2(%arg0: i32) -> (i32, i32) {
    %c0_i32 = arith.constant 0 : i32
    %c0_i32_0 = arith.constant 0 : i32
    %c0_i32_1 = arith.constant 0 : i32
    return %c0_i32, %c0_i32_0 : i32, i32
  }
  func.func @transform_3(%arg0: i32) -> (i32, i32, i32) {
    %c0_i32 = arith.constant 0 : i32
    %c0_i32_0 = arith.constant 0 : i32
    %c0_i32_1 = arith.constant 0 : i32
    return %arg0, %c0_i32, %c0_i32_0 : i32, i32, i32
  }
}

module attributes {stable_mosaic.version = 11 : i64} {
  func.func @_fc_fused_kernel(%arg0: i32, %arg1: memref<2x512xbf16, #tpu.memory_space<vmem>>, %arg2: memref<512x128xbf16, #tpu.memory_space<vmem>>, %arg3: memref<1x128xf32, #tpu.memory_space<vmem>>, %arg4: memref<128x128xbf16, #tpu.memory_space<vmem>>, %arg5: memref<1x128xf32, #tpu.memory_space<vmem>>, %arg6: memref<2x128xf32, #tpu.memory_space<vmem>>, %arg7: memref<2x128xf32, #tpu.memory_space<vmem>>) attributes {dimension_semantics = [#tpu.dimension_semantics<arbitrary>], iteration_bounds = array<i64: 1>, scalar_prefetch = 0 : i64, scratch_operands = 1 : i64, tpu.core_type = #tpu.core_type<tc>, window_params = [{transform_indices = @transform_0, window_bounds = array<i64: 2, 512>}, {transform_indices = @transform_1, window_bounds = array<i64: 512, 128>}, {pipeline_mode = #tpu.pipeline_mode<synchronous>, transform_indices = @transform_2, window_bounds = array<i64: 1, 128>}, {pipeline_mode = #tpu.pipeline_mode<synchronous>, transform_indices = @transform_3, window_bounds = array<i64: 128, 128>}, {pipeline_mode = #tpu.pipeline_mode<synchronous>, transform_indices = @transform_4, window_bounds = array<i64: 1, 128>}, {pipeline_mode = #tpu.pipeline_mode<synchronous>, transform_indices = @transform_5, window_bounds = array<i64: 2, 128>}]} {
    %c0_i32 = arith.constant 0 : i32
    %0 = arith.cmpi eq, %arg0, %c0_i32 : i32
    %1 = arith.extui %0 : i1 to i32
    %c0_i32_0 = arith.constant 0 : i32
    %2 = arith.cmpi ne, %1, %c0_i32_0 : i32
    scf.if %2 {
      %cst_10 = arith.constant 0.000000e+00 : f32
      %12 = vector.broadcast %cst_10 : f32 to vector<2x128xf32>
      %c0_11 = arith.constant 0 : index
      %c0_12 = arith.constant 0 : index
      %13 = vector.load %arg7[%c0_11, %c0_12] : memref<2x128xf32, #tpu.memory_space<vmem>>, vector<2x128xf32>
      tpu.vector_store %arg7[%c0_11, %c0_12], %12 {strides = array<i32>} : memref<2x128xf32, #tpu.memory_space<vmem>>, vector<2x128xf32>,
    } else {
    }
    %c0 = arith.constant 0 : index
    %c0_1 = arith.constant 0 : index
    %3 = vector.load %arg7[%c0, %c0_1] : memref<2x128xf32, #tpu.memory_space<vmem>>, vector<2x128xf32>
    %c0_2 = arith.constant 0 : index
    %c0_3 = arith.constant 0 : index
    %4 = vector.load %arg1[%c0_2, %c0_3] : memref<2x512xbf16, #tpu.memory_space<vmem>>, vector<2x512xbf16>
    %c0_4 = arith.constant 0 : index
    %c0_5 = arith.constant 0 : index
    %5 = vector.load %arg2[%c0_4, %c0_5] : memref<512x128xbf16, #tpu.memory_space<vmem>>, vector<512x128xbf16>
    %cst = arith.constant dense<0.000000e+00> : vector<2x128xf32>
    %6 = tpu.matmul %4, %5, %cst {dimension_numbers = #tpu.dot_dimension_numbers<[1], [0], [0], [1], [0, 0, 1, 1], [], []>} : vector<2x512xbf16>, vector<512x128xbf16>, vector<2x128xf32> -> vector<2x128xf32>
    %7 = arith.addf %3, %6 : vector<2x128xf32>
    %c0_6 = arith.constant 0 : index
    %c0_7 = arith.constant 0 : index
    %8 = vector.load %arg7[%c0_6, %c0_7] : memref<2x128xf32, #tpu.memory_space<vmem>>, vector<2x128xf32>
    tpu.vector_store %arg7[%c0_6, %c0_7], %7 {strides = array<i32>} : memref<2x128xf32, #tpu.memory_space<vmem>>, vector<2x128xf32>,
    %c0_i32_8 = arith.constant 0 : i32
    %9 = arith.cmpi eq, %arg0, %c0_i32_8 : i32
    %10 = arith.extui %9 : i1 to i32
    %c0_i32_9 = arith.constant 0 : i32
    %11 = arith.cmpi ne, %10, %c0_i32_9 : i32
    scf.if %11 {
      %c0_10 = arith.constant 0 : index
      %c0_11 = arith.constant 0 : index
      %12 = vector.load %arg7[%c0_10, %c0_11] : memref<2x128xf32, #tpu.memory_space<vmem>>, vector<2x128xf32>
      %c0_12 = arith.constant 0 : index
      %c0_13 = arith.constant 0 : index
      %13 = vector.load %arg3[%c0_12, %c0_13] : memref<1x128xf32, #tpu.memory_space<vmem>>, vector<1x128xf32>
      %14 = vector.broadcast %13 : vector<1x128xf32> to vector<2x128xf32>
      %15 = arith.addf %12, %14 : vector<2x128xf32>
      %cst_14 = arith.constant 0.000000e+00 : f32
      %16 = vector.broadcast %cst_14 : f32 to vector<2x128xf32>
      %17 = arith.maximumf %15, %16 : vector<2x128xf32>
      %18 = arith.truncf %17 : vector<2x128xf32> to vector<2x128xbf16>
      %c0_15 = arith.constant 0 : index
      %c0_16 = arith.constant 0 : index
      %19 = vector.load %arg4[%c0_15, %c0_16] : memref<128x128xbf16, #tpu.memory_space<vmem>>, vector<128x128xbf16>
      %cst_17 = arith.constant dense<0.000000e+00> : vector<2x128xf32>
      %20 = tpu.matmul %18, %19, %cst_17 {dimension_numbers = #tpu.dot_dimension_numbers<[1], [0], [0], [1], [0, 0, 1, 1], [], []>} : vector<2x128xbf16>, vector<128x128xbf16>, vector<2x128xf32> -> vector<2x128xf32>
      %c0_18 = arith.constant 0 : index
      %c0_19 = arith.constant 0 : index
      %21 = vector.load %arg5[%c0_18, %c0_19] : memref<1x128xf32, #tpu.memory_space<vmem>>, vector<1x128xf32>
      %22 = vector.broadcast %21 : vector<1x128xf32> to vector<2x128xf32>
      %23 = arith.addf %20, %22 : vector<2x128xf32>
      %c0_20 = arith.constant 0 : index
      %c0_21 = arith.constant 0 : index
      %24 = vector.load %arg6[%c0_20, %c0_21] : memref<2x128xf32, #tpu.memory_space<vmem>>, vector<2x128xf32>
      tpu.vector_store %arg6[%c0_20, %c0_21], %23 {strides = array<i32>} : memref<2x128xf32, #tpu.memory_space<vmem>>, vector<2x128xf32>,
    } else {
    }
    return
  }
  func.func @transform_0(%arg0: i32) -> (i32, i32) {
    %c0_i32 = arith.constant 0 : i32
    %c0_i32_0 = arith.constant 0 : i32
    return %c0_i32, %arg0 : i32, i32
  }
  func.func @transform_1(%arg0: i32) -> (i32, i32) {
    %c0_i32 = arith.constant 0 : i32
    %c0_i32_0 = arith.constant 0 : i32
    return %arg0, %c0_i32 : i32, i32
  }
  func.func @transform_2(%arg0: i32) -> (i32, i32) {
    %c0_i32 = arith.constant 0 : i32
    %c0_i32_0 = arith.constant 0 : i32
    %c0_i32_1 = arith.constant 0 : i32
    return %c0_i32, %c0_i32_0 : i32, i32
  }
  func.func @transform_3(%arg0: i32) -> (i32, i32) {
    %c0_i32 = arith.constant 0 : i32
    %c0_i32_0 = arith.constant 0 : i32
    %c0_i32_1 = arith.constant 0 : i32
    return %c0_i32, %c0_i32_0 : i32, i32
  }
  func.func @transform_4(%arg0: i32) -> (i32, i32) {
    %c0_i32 = arith.constant 0 : i32
    %c0_i32_0 = arith.constant 0 : i32
    %c0_i32_1 = arith.constant 0 : i32
    return %c0_i32, %c0_i32_0 : i32, i32
  }
  func.func @transform_5(%arg0: i32) -> (i32, i32) {
    %c0_i32 = arith.constant 0 : i32
    %c0_i32_0 = arith.constant 0 : i32
    %c0_i32_1 = arith.constant 0 : i32
    return %c0_i32, %c0_i32_0 : i32, i32
  }
}

</mosaic_0001>

<llo_original>
// kernel: genre_classifier_forward.3
$region0: #{genre_classifier_forward.3}
  #allocation0 [shape = 'u32[]', space=smem, size = 0x4, offset = 0x4, fixed_abs, tag = 'smem constant byte address 0x4 - core index']
  #allocation1 [shape = 'u32[144,128]{1,0:T(1,128)}', space=vmem, size = 0x12000, scoped, tag = 'internal scratch']
  %s0 = inlined_call_operand.vmem [shape: bf16[2,4,16,128], index: 0, kind: input, shape index: {}]
  %s1 = inlined_call_operand.vmem [shape: bf16[3,128,256], index: 1, kind: input, shape index: {}]
  %s2 = inlined_call_operand.vmem [shape: f32[1,128], index: 2, kind: input, shape index: {}]
  %s3 = inlined_call_operand.vmem [shape: bf16[2,16,128], index: 3, kind: output, shape index: {}]
  %s4 = sld [smem:[#allocation0]]
  $region45: #{genre_classifier_forward.3} parent=0
    _
  %s6 = ssub.s32 1, %s4
  %s7 = scalar_select 0, %s6, %s4
  loop: start=0, step=1, limit=4
  $region2: #{genre_classifier_forward.3} parent=0 // loop_pre_header
    _
  $region3: #{genre_classifier_forward.3} parent=0 // loop_header
    %s9 = sphi 0, %s13
    %p10 = scmp.ge.s32.totalorder %s9, 4
    %s19 = sphi 0, %s21
    %s22 = sphi 0, %s19
    %s23 = sphi 0, %s22
    %s39 = sphi 0, %s23
    %s43 = sphi 0, %s43
    %s45 = sphi 0, %s43
    %s46 = sphi 0, %s45
    %s60 = sphi 0, %s46
    %s64 = sphi 0, %s64
    %s66 = sphi 0, %s64
    %s67 = sphi 0, %s66
    %s81 = sphi 0, %s67
    %s87 = sphi 0, %s89
    %s90 = sphi 0, %s87
    %s91 = sphi 0, %s90
    %s107 = sphi 0, %s91
  $region4: #{genre_classifier_forward.3} parent=0 // loop_header_branch
    %12 = sbr.rel (%p10) target = $region8
  $region5: #{genre_classifier_forward.3} parent=0 // loop_body
    %s14 = ssub.s32 %s9, 1
    %s15 = ssub.s32 %s9, 2
    %s16 = sadd.s32 %s9, 1
    %s17 = ssub.s32 %s9, %s16
    %p18 = scmp.eq.s32.totalorder %s17, 0
    %s20 = sadd.s32 %s19, 1
    %s21 = scalar_select %p18, %s19, %s20
    %p24 = pneg %p18
    %p25 = scmp.eq.s32.totalorder %s9, 1
    %p26 = por %p24, %p25
    %p27 = scmp.ne.s32.totalorder %s19, %s22
    %p28 = scmp.eq.s32.totalorder %s9, 0
    %p29 = por %p27, %p28
    %p30 = scmp.ne.s32.totalorder %s19, %s22
    %p31 = scmp.eq.s32.totalorder %s14, 1
    %p32 = por %p30, %p31
    %p33 = scmp.ne.s32.totalorder %s22, %s23
    %p34 = scmp.eq.s32.totalorder %s14, 0
    %p35 = por %p33, %p34
    %p36 = scmp.ne.s32.totalorder %s22, %s23
    %p37 = scmp.eq.s32.totalorder %s15, 1
    %p38 = por %p36, %p37
    %p40 = scmp.ne.s32.totalorder %s23, %s39
    %p41 = scmp.eq.s32.totalorder %s15, 0
    %p42 = por %p40, %p41
    %s44 = sadd.s32 %s43, 1
    %p47 = scmp.eq.s32.totalorder %s9, 1
    %p48 = scmp.ne.s32.totalorder %s43, %s45
    %p49 = scmp.eq.s32.totalorder %s9, 0
    %p50 = por %p48, %p49
    %p51 = scmp.ne.s32.totalorder %s43, %s45
    %p52 = scmp.eq.s32.totalorder %s14, 1
    %p53 = por %p51, %p52
    %p54 = scmp.ne.s32.totalorder %s45, %s46
    %p55 = scmp.eq.s32.totalorder %s14, 0
    %p56 = por %p54, %p55
    %p57 = scmp.ne.s32.totalorder %s45, %s46
    %p58 = scmp.eq.s32.totalorder %s15, 1
    %p59 = por %p57, %p58
    %p61 = scmp.ne.s32.totalorder %s46, %s60
    %p62 = scmp.eq.s32.totalorder %s15, 0
    %p63 = por %p61, %p62
    %s65 = sadd.s32 %s64, 1
    %p68 = scmp.eq.s32.totalorder %s9, 1
    %p69 = scmp.ne.s32.totalorder %s64, %s66
    %p70 = scmp.eq.s32.totalorder %s9, 0
    %p71 = por %p69, %p70
    %p72 = scmp.ne.s32.totalorder %s64, %s66
    %p73 = scmp.eq.s32.totalorder %s14, 1
    %p74 = por %p72, %p73
    %p75 = scmp.ne.s32.totalorder %s66, %s67
    %p76 = scmp.eq.s32.totalorder %s14, 0
    %p77 = por %p75, %p76
    %p78 = scmp.ne.s32.totalorder %s66, %s67
    %p79 = scmp.eq.s32.totalorder %s15, 1
    %p80 = por %p78, %p79
    %p82 = scmp.ne.s32.totalorder %s67, %s81
    %p83 = scmp.eq.s32.totalorder %s15, 0
    %p84 = por %p82, %p83
    %s85 = ssub.s32 %s9, %s16
    %p86 = scmp.eq.s32.totalorder %s85, 0
    %s88 = sadd.s32 %s87, 1
    %s89 = scalar_select %p86, %s87, %s88
    %p92 = pneg %p86
    %p93 = scmp.eq.s32.totalorder %s9, 1
    %p94 = por %p92, %p93
    %p95 = scmp.ne.s32.totalorder %s87, %s90
    %p96 = scmp.eq.s32.totalorder %s9, 0
    %p97 = por %p95, %p96
    %p98 = scmp.ne.s32.totalorder %s87, %s90
    %p99 = scmp.eq.s32.totalorder %s14, 1
    %p100 = por %p98, %p99
    %p101 = scmp.ne.s32.totalorder %s90, %s91
    %p102 = scmp.eq.s32.totalorder %s14, 0
    %p103 = por %p101, %p102
    %p104 = scmp.ne.s32.totalorder %s90, %s91
    %p105 = scmp.eq.s32.totalorder %s15, 1
    %p106 = por %p104, %p105
    %p108 = scmp.ne.s32.totalorder %s91, %s107
    %p109 = scmp.eq.s32.totalorder %s15, 0
    %p110 = por %p108, %p109
    %p111 = scmp.le.s32.totalorder 1, %s9
    %p112 = scmp.lt.s32.totalorder %s9, 3
    %p113 = pnand %p111, %p112
    %p114 = pneg %p113
    // Predicated region
    $region9: #{genre_classifier_forward.3} parent=5 // pred_check
      _
    $region10: #{genre_classifier_forward.3} parent=5 // pred_check_branch
      %116 = sbr.rel (%p113) target = $region12
    $region11: #{genre_classifier_forward.3} parent=5 // pred_region
      %s117 = ssub.s32 %s9, 1
      // Predicated region
      $region13: #{genre_classifier_forward.3} parent=11 // pred_check
        %p118 = pneg %p56
      $region14: #{genre_classifier_forward.3} parent=11 // pred_check_branch
        %120 = sbr.rel (%p118) target = $region16
      $region15: #{genre_classifier_forward.3} parent=11 // pred_region
        _
      $region16: #{genre_classifier_forward.3} parent=11 // pred_fallthru
        _
      // Predicated region
      $region17: #{genre_classifier_forward.3} parent=11 // pred_check
        %p121 = pneg %p77
      $region18: #{genre_classifier_forward.3} parent=11 // pred_check_branch
        %123 = sbr.rel (%p121) target = $region20
      $region19: #{genre_classifier_forward.3} parent=11 // pred_region
        _
      $region20: #{genre_classifier_forward.3} parent=11 // pred_fallthru
        _
    $region12: #{genre_classifier_forward.3} parent=5 // pred_fallthru
      _
    %p124 = scmp.lt.s32.totalorder %s9, 2
    // Predicated region
    $region21: #{genre_classifier_forward.3} parent=5 // pred_check
      %p125 = pneg %p124
    $region22: #{genre_classifier_forward.3} parent=5 // pred_check_branch
      %127 = sbr.rel (%p125) target = $region24
    $region23: #{genre_classifier_forward.3} parent=5 // pred_region
      // Predicated region
      $region25: #{genre_classifier_forward.3} parent=23 // pred_check
        %p128 = pneg %p29
      $region26: #{genre_classifier_forward.3} parent=23 // pred_check_branch
        %130 = sbr.rel (%p128) target = $region28
      $region27: #{genre_classifier_forward.3} parent=23 // pred_region
        %p131 = scmp.lt.s32.totalorder %s9, 1
        %s132 = scalar_select %p131, %s9, 1
        %s133 = smul.addr %s132, 8
        %s134 = smul.addr %s133, 4
        %s135 = scalar_lea.vmem %s0, %s134
      $region28: #{genre_classifier_forward.3} parent=23 // pred_fallthru
        _
    $region24: #{genre_classifier_forward.3} parent=5 // pred_fallthru
      _
    %p136 = scmp.le.s32.totalorder 1, %s9
    %p137 = scmp.lt.s32.totalorder %s9, 3
    %p138 = pnand %p136, %p137
    %p139 = pneg %p138
    // Predicated region
    $region29: #{genre_classifier_forward.3} parent=5 // pred_check
      _
    $region30: #{genre_classifier_forward.3} parent=5 // pred_check_branch
      %141 = sbr.rel (%p138) target = $region32
    $region31: #{genre_classifier_forward.3} parent=5 // pred_region
      %s142 = ssub.s32 %s9, 1
      %p143 = scmp.lt.s32.totalorder %s14, 1
      %s144 = scalar_select %p143, %s14, 1
      %s145 = smul.addr %s144, 8
      %s146 = smul.addr %s145, 4
      %s147 = scalar_lea.vmem %s0, %s146
      %p148 = pneg %p35
      %p149 = pneg %p32
      %p150 = pneg %p56
      %p151 = pneg %p53
      %p152 = pneg %p77
      %p153 = pneg %p74
      %p154 = pneg %p103
      %p155 = pneg %p100
      %p156 = scmp.lt.s32.totalorder %s14, 1
      %s157 = scalar_select %p156, %s14, 1
      %s158 = smul.addr %s157, 2
      %s159 = smul.addr %s158, 4
      %s160 = scalar_lea.vmem %s3, %s159
      %p161 = scmp.lt.s32.totalorder %s14, 1
      %s162 = scalar_select %p161, %s14, 1
      %s163 = smul.addr %s162, 8
      %s164 = smul.addr %s163, 4
      %s165 = scalar_lea.vmem %s0, %s164
      %p166 = scmp.lt.s32.totalorder %s14, 1
      %s167 = scalar_select %p166, %s14, 1
      %s168 = smul.addr %s167, 2
      %s169 = smul.addr %s168, 4
      %s170 = scalar_lea.vmem %s3, %s169
      %v172 = vld [vmem:[%s165] sm:$0xf]
      %v173 = vld [vmem:[%s165 + $0x4] sm:$0xf]
      %v174 = vld [vmem:[%s165 + $0x8] sm:$0xf]
      %v175 = vld [vmem:[%s165 + $0xc] sm:$0xf]
      %v176 = vld [vmem:[%s165 + $0x10] sm:$0xf]
      %v177 = vld [vmem:[%s165 + $0x14] sm:$0xf]
      %v178 = vld [vmem:[%s165 + $0x18] sm:$0xf]
      %v179 = vld [vmem:[%s165 + $0x1c] sm:$0xf]
      %v180 = vld [vmem:[%s1] sm:$0xff]
      %v181 = vld [vmem:[%s1 + $0x8] sm:$0xff]
      %v182 = vld [vmem:[%s1 + $0x10] sm:$0xff]
      %v183 = vld [vmem:[%s1 + $0x18] sm:$0xff]
      %v184 = vld [vmem:[%s1 + $0x20] sm:$0xff]
      %v185 = vld [vmem:[%s1 + $0x28] sm:$0xff]
      %v186 = vld [vmem:[%s1 + $0x30] sm:$0xff]
      %v187 = vld [vmem:[%s1 + $0x38] sm:$0xff]
      %v188 = vld [vmem:[%s1 + $0x40] sm:$0xff]
      %v189 = vld [vmem:[%s1 + $0x48] sm:$0xff]
      %v190 = vld [vmem:[%s1 + $0x50] sm:$0xff]
      %v191 = vld [vmem:[%s1 + $0x58] sm:$0xff]
      %v192 = vld [vmem:[%s1 + $0x60] sm:$0xff]
      %v193 = vld [vmem:[%s1 + $0x68] sm:$0xff]
      %v194 = vld [vmem:[%s1 + $0x70] sm:$0xff]
      %v195 = vld [vmem:[%s1 + $0x78] sm:$0xff]
      %s196 = scalar_lea.vmem %s1, 128
      %v197 = vld [vmem:[%s196] sm:$0xff]
      %v198 = vld [vmem:[%s196 + $0x8] sm:$0xff]
      %v199 = vld [vmem:[%s196 + $0x10] sm:$0xff]
      %v200 = vld [vmem:[%s196 + $0x18] sm:$0xff]
      %v201 = vld [vmem:[%s196 + $0x20] sm:$0xff]
      %v202 = vld [vmem:[%s196 + $0x28] sm:$0xff]
      %v203 = vld [vmem:[%s196 + $0x30] sm:$0xff]
      %v204 = vld [vmem:[%s196 + $0x38] sm:$0xff]
      %v205 = vld [vmem:[%s196 + $0x40] sm:$0xff]
      %v206 = vld [vmem:[%s196 + $0x48] sm:$0xff]
      %v207 = vld [vmem:[%s196 + $0x50] sm:$0xff]
      %v208 = vld [vmem:[%s196 + $0x58] sm:$0xff]
      %v209 = vld [vmem:[%s196 + $0x60] sm:$0xff]
      %v210 = vld [vmem:[%s196 + $0x68] sm:$0xff]
      %v211 = vld [vmem:[%s196 + $0x70] sm:$0xff]
      %v212 = vld [vmem:[%s196 + $0x78] sm:$0xff]
      %v217 = vunpack.c.l.b16 %v174
      %v218 = vunpack.c.l.b16 %v175
      %v219 = vunpack.c.l.b16 %v176
      %v220 = vunpack.c.l.b16 %v177
      %v221 = vpack.c.b16 %v218, %v217
      %v222 = vpack.c.b16 %v220, %v219
      %v241 = vunpack.c.l.b16 %v197
      %v242 = vunpack.c.h.b16 %v197
      %v243 = vunpack.c.l.b16 %v198
      %v244 = vunpack.c.h.b16 %v198
      %v245 = vunpack.c.l.b16 %v199
      %v246 = vunpack.c.h.b16 %v199
      %v247 = vunpack.c.l.b16 %v200
      %v248 = vunpack.c.h.b16 %v200
      %v249 = vunpack.c.l.b16 %v201
      %v250 = vunpack.c.h.b16 %v201
      %v251 = vunpack.c.l.b16 %v202
      %v252 = vunpack.c.h.b16 %v202
      %v253 = vunpack.c.l.b16 %v203
      %v254 = vunpack.c.h.b16 %v203
      %v255 = vunpack.c.l.b16 %v204
      %v256 = vunpack.c.h.b16 %v204
      %v257 = vunpack.c.l.b16 %v205
      %v258 = vunpack.c.h.b16 %v205
      %v259 = vunpack.c.l.b16 %v206
      %v260 = vunpack.c.h.b16 %v206
      %v261 = vunpack.c.l.b16 %v207
      %v262 = vunpack.c.h.b16 %v207
      %v263 = vunpack.c.l.b16 %v208
      %v264 = vunpack.c.h.b16 %v208
      %v265 = vunpack.c.l.b16 %v209
      %v266 = vunpack.c.h.b16 %v209
      %v267 = vunpack.c.l.b16 %v210
      %v268 = vunpack.c.h.b16 %v210
      %v269 = vunpack.c.l.b16 %v211
      %v270 = vunpack.c.h.b16 %v211
      %v271 = vunpack.c.l.b16 %v212
      %v272 = vunpack.c.h.b16 %v212
      %v273 = vpack.c.b16 %v243, %v241
      %v274 = vpack.c.b16 %v244, %v242
      %v275 = vpack.c.b16 %v247, %v245
      %v276 = vpack.c.b16 %v248, %v246
      %v277 = vpack.c.b16 %v251, %v249
      %v278 = vpack.c.b16 %v252, %v250
      %v279 = vpack.c.b16 %v255, %v253
      %v280 = vpack.c.b16 %v256, %v254
      %v281 = vpack.c.b16 %v259, %v257
      %v282 = vpack.c.b16 %v260, %v258
      %v283 = vpack.c.b16 %v263, %v261
      %v284 = vpack.c.b16 %v264, %v262
      %v285 = vpack.c.b16 %v267, %v265
      %v286 = vpack.c.b16 %v268, %v266
      %v287 = vpack.c.b16 %v271, %v269
      %v288 = vpack.c.b16 %v272, %v270
      %305 = vmatprep.subr.bf16.mxu0 %v274
      %306 = vmatpush1.bf16.msra.mxu0 %v273
      %307 = vmatprep.subr.bf16.mxu0 %v276
      %308 = vmatpush1.bf16.msra.mxu0 %v275
      %309 = vmatprep.subr.bf16.mxu0 %v278
      %310 = vmatpush1.bf16.msra.mxu0 %v277
      %311 = vmatprep.subr.bf16.mxu0 %v280
      %312 = vmatpush1.bf16.msra.mxu0 %v279
      %313 = vmatprep.subr.bf16.mxu0 %v282
      %314 = vmatpush1.bf16.msra.mxu0 %v281
      %315 = vmatprep.subr.bf16.mxu0 %v284
      %316 = vmatpush1.bf16.msra.mxu0 %v283
      %317 = vmatprep.subr.bf16.mxu0 %v286
      %318 = vmatpush1.bf16.msra.mxu0 %v285
      %319 = vmatprep.subr.bf16.mxu0 %v288
      %320 = vmatpush1.bf16.msra.mxu0 %v287
      %321 = vmatprep.subr.bf16.mxu0 0
      %322 = vmatpush1.bf16.msra.mxu0 0
      %323 = vmatprep.subr.bf16.mxu0 0
      %324 = vmatpush1.bf16.msra.mxu0 0
      %325 = vmatprep.subr.bf16.mxu0 0
      %326 = vmatpush1.bf16.msra.mxu0 0
      %327 = vmatprep.subr.bf16.mxu0 0
      %328 = vmatpush1.bf16.msra.mxu0 0
      %329 = vmatprep.subr.bf16.mxu0 0
      %330 = vmatpush1.bf16.msra.mxu0 0
      %331 = vmatprep.subr.bf16.mxu0 0
      %332 = vmatpush1.bf16.msra.mxu0 0
      %333 = vmatprep.subr.bf16.mxu0 0
      %334 = vmatpush1.bf16.msra.mxu0 0
      %335 = vmatprep.subr.bf16.mxu0 0
      %336 = vmatpush1.bf16.msra.mxu0 0
      %337 = vmatprep.mubr.bf16.mxu0 0
      %338 = vmatmul.mubr.bf16.gmra.mrb[0].mxu0 %v221
      %v339 = vpop.f32.mrb[0].mxu0
      %v340 = vadd.f32 0.0, %v339
      %v341 = vpop.f32.mrb[0].mxu0
      %v342 = vadd.f32 0.0, %v341
      %v343 = vpop.f32.mrb[0].mxu0
      %v344 = vadd.f32 0.0, %v343
      %v345 = vpop.f32.mrb[0].mxu0
      %v346 = vadd.f32 0.0, %v345
      %347 = vmatprep.mubr.bf16.mxu0 0
      %348 = vmatmul.mubr.bf16.gmra.mrb[0].mxu0 %v222
      %v349 = vpop.f32.mrb[0].mxu0
      %v350 = vadd.f32 0.0, %v349
      %v351 = vpop.f32.mrb[0].mxu0
      %v352 = vadd.f32 0.0, %v351
      %v353 = vpop.f32.mrb[0].mxu0
      %v354 = vadd.f32 0.0, %v353
      %v355 = vpop.f32.mrb[0].mxu0
      %v356 = vadd.f32 0.0, %v355
      %357 = vdwg.mxu0
      %v360 = vunpack.c.l.b16 %v172
      %v361 = vunpack.c.l.b16 %v173
      %v362 = vpack.c.b16 %v361, %v360
      %v380 = vunpack.c.l.b16 %v180
      %v381 = vunpack.c.h.b16 %v180
      %v382 = vunpack.c.l.b16 %v181
      %v383 = vunpack.c.h.b16 %v181
      %v384 = vunpack.c.l.b16 %v182
      %v385 = vunpack.c.h.b16 %v182
      %v386 = vunpack.c.l.b16 %v183
      %v387 = vunpack.c.h.b16 %v183
      %v388 = vunpack.c.l.b16 %v184
      %v389 = vunpack.c.h.b16 %v184
      %v390 = vunpack.c.l.b16 %v185
      %v391 = vunpack.c.h.b16 %v185
      %v392 = vunpack.c.l.b16 %v186
      %v393 = vunpack.c.h.b16 %v186
      %v394 = vunpack.c.l.b16 %v187
      %v395 = vunpack.c.h.b16 %v187
      %v396 = vunpack.c.l.b16 %v188
      %v397 = vunpack.c.h.b16 %v188
      %v398 = vunpack.c.l.b16 %v189
      %v399 = vunpack.c.h.b16 %v189
      %v400 = vunpack.c.l.b16 %v190
      %v401 = vunpack.c.h.b16 %v190
      %v402 = vunpack.c.l.b16 %v191
      %v403 = vunpack.c.h.b16 %v191
      %v404 = vunpack.c.l.b16 %v192
      %v405 = vunpack.c.h.b16 %v192
      %v406 = vunpack.c.l.b16 %v193
      %v407 = vunpack.c.h.b16 %v193
      %v408 = vunpack.c.l.b16 %v194
      %v409 = vunpack.c.h.b16 %v194
      %v410 = vunpack.c.l.b16 %v195
      %v411 = vunpack.c.h.b16 %v195
      %v412 = vpack.c.b16 %v382, %v380
      %v413 = vpack.c.b16 %v383, %v381
      %v414 = vpack.c.b16 %v386, %v384
      %v415 = vpack.c.b16 %v387, %v385
      %v416 = vpack.c.b16 %v390, %v388
      %v417 = vpack.c.b16 %v391, %v389
      %v418 = vpack.c.b16 %v394, %v392
      %v419 = vpack.c.b16 %v395, %v393
      %v420 = vpack.c.b16 %v398, %v396
      %v421 = vpack.c.b16 %v399, %v397
      %v422 = vpack.c.b16 %v402, %v400
      %v423 = vpack.c.b16 %v403, %v401
      %v424 = vpack.c.b16 %v406, %v404
      %v425 = vpack.c.b16 %v407, %v405
      %v426 = vpack.c.b16 %v410, %v408
      %v427 = vpack.c.b16 %v411, %v409
      %444 = vmatprep.subr.bf16.mxu0 %v413
      %445 = vmatpush1.bf16.msra.mxu0 %v412
      %446 = vmatprep.subr.bf16.mxu0 %v415
      %447 = vmatpush1.bf16.msra.mxu0 %v414
      %448 = vmatprep.subr.bf16.mxu0 %v417
      %449 = vmatpush1.bf16.msra.mxu0 %v416
      %450 = vmatprep.subr.bf16.mxu0 %v419
      %451 = vmatpush1.bf16.msra.mxu0 %v418
      %452 = vmatprep.subr.bf16.mxu0 %v421
      %453 = vmatpush1.bf16.msra.mxu0 %v420
      %454 = vmatprep.subr.bf16.mxu0 %v423
      %455 = vmatpush1.bf16.msra.mxu0 %v422
      %456 = vmatprep.subr.bf16.mxu0 %v425
      %457 = vmatpush1.bf16.msra.mxu0 %v424
      %458 = vmatprep.subr.bf16.mxu0 %v427
      %459 = vmatpush1.bf16.msra.mxu0 %v426
      %460 = vmatprep.subr.bf16.mxu0 0
      %461 = vmatpush1.bf16.msra.mxu0 0
      %462 = vmatprep.subr.bf16.mxu0 0
      %463 = vmatpush1.bf16.msra.mxu0 0
      %464 = vmatprep.subr.bf16.mxu0 0
      %465 = vmatpush1.bf16.msra.mxu0 0
      %466 = vmatprep.subr.bf16.mxu0 0
      %467 = vmatpush1.bf16.msra.mxu0 0
      %468 = vmatprep.subr.bf16.mxu0 0
      %469 = vmatpush1.bf16.msra.mxu0 0
      %470 = vmatprep.subr.bf16.mxu0 0
      %471 = vmatpush1.bf16.msra.mxu0 0
      %472 = vmatprep.subr.bf16.mxu0 0
      %473 = vmatpush1.bf16.msra.mxu0 0
      %474 = vmatprep.subr.bf16.mxu0 0
      %475 = vmatpush1.bf16.msra.mxu0 0
      %476 = vmatprep.mubr.bf16.mxu0 0
      %477 = vmatmul.mubr.bf16.gmra.mrb[0].mxu0 %v362
      %v478 = vpop.f32.mrb[0].mxu0
      %v479 = vadd.f32 %v340, %v478
      %v480 = vpop.f32.mrb[0].mxu0
      %v481 = vadd.f32 %v342, %v480
      %v482 = vpop.f32.mrb[0].mxu0
      %v483 = vadd.f32 %v344, %v482
      %v484 = vpop.f32.mrb[0].mxu0
      %v485 = vadd.f32 %v346, %v484
      %486 = vmatprep.mubr.bf16.mxu0 0
      %487 = vmatmul.mubr.bf16.gmra.mrb[0].mxu0 %v221
      %v488 = vpop.f32.mrb[0].mxu0
      %v489 = vadd.f32 %v350, %v488
      %v490 = vpop.f32.mrb[0].mxu0
      %v491 = vadd.f32 %v352, %v490
      %v492 = vpop.f32.mrb[0].mxu0
      %v493 = vadd.f32 %v354, %v492
      %v494 = vpop.f32.mrb[0].mxu0
      %v495 = vadd.f32 %v356, %v494
      %496 = vdwg.mxu0
      %s497 = scalar_lea.vmem %s1, 256
      %v498 = vld [vmem:[%s497] sm:$0xff]
      %v499 = vld [vmem:[%s497 + $0x8] sm:$0xff]
      %v500 = vld [vmem:[%s497 + $0x10] sm:$0xff]
      %v501 = vld [vmem:[%s497 + $0x18] sm:$0xff]
      %v502 = vld [vmem:[%s497 + $0x20] sm:$0xff]
      %v503 = vld [vmem:[%s497 + $0x28] sm:$0xff]
      %v504 = vld [vmem:[%s497 + $0x30] sm:$0xff]
      %v505 = vld [vmem:[%s497 + $0x38] sm:$0xff]
      %v506 = vld [vmem:[%s497 + $0x40] sm:$0xff]
      %v507 = vld [vmem:[%s497 + $0x48] sm:$0xff]
      %v508 = vld [vmem:[%s497 + $0x50] sm:$0xff]
      %v509 = vld [vmem:[%s497 + $0x58] sm:$0xff]
      %v510 = vld [vmem:[%s497 + $0x60] sm:$0xff]
      %v511 = vld [vmem:[%s497 + $0x68] sm:$0xff]
      %v512 = vld [vmem:[%s497 + $0x70] sm:$0xff]
      %v513 = vld [vmem:[%s497 + $0x78] sm:$0xff]
      %v516 = vunpack.c.l.b16 %v178
      %v517 = vunpack.c.l.b16 %v179
      %v518 = vpack.c.b16 %v517, %v516
      %v536 = vunpack.c.l.b16 %v498
      %v537 = vunpack.c.h.b16 %v498
      %v538 = vunpack.c.l.b16 %v499
      %v539 = vunpack.c.h.b16 %v499
      %v540 = vunpack.c.l.b16 %v500
      %v541 = vunpack.c.h.b16 %v500
      %v542 = vunpack.c.l.b16 %v501
      %v543 = vunpack.c.h.b16 %v501
      %v544 = vunpack.c.l.b16 %v502
      %v545 = vunpack.c.h.b16 %v502
      %v546 = vunpack.c.l.b16 %v503
      %v547 = vunpack.c.h.b16 %v503
      %v548 = vunpack.c.l.b16 %v504
      %v549 = vunpack.c.h.b16 %v504
      %v550 = vunpack.c.l.b16 %v505
      %v551 = vunpack.c.h.b16 %v505
      %v552 = vunpack.c.l.b16 %v506
      %v553 = vunpack.c.h.b16 %v506
      %v554 = vunpack.c.l.b16 %v507
      %v555 = vunpack.c.h.b16 %v507
      %v556 = vunpack.c.l.b16 %v508
      %v557 = vunpack.c.h.b16 %v508
      %v558 = vunpack.c.l.b16 %v509
      %v559 = vunpack.c.h.b16 %v509
      %v560 = vunpack.c.l.b16 %v510
      %v561 = vunpack.c.h.b16 %v510
      %v562 = vunpack.c.l.b16 %v511
      %v563 = vunpack.c.h.b16 %v511
      %v564 = vunpack.c.l.b16 %v512
      %v565 = vunpack.c.h.b16 %v512
      %v566 = vunpack.c.l.b16 %v513
      %v567 = vunpack.c.h.b16 %v513
      %v568 = vpack.c.b16 %v538, %v536
      %v569 = vpack.c.b16 %v539, %v537
      %v570 = vpack.c.b16 %v542, %v540
      %v571 = vpack.c.b16 %v543, %v541
      %v572 = vpack.c.b16 %v546, %v544
      %v573 = vpack.c.b16 %v547, %v545
      %v574 = vpack.c.b16 %v550, %v548
      %v575 = vpack.c.b16 %v551, %v549
      %v576 = vpack.c.b16 %v554, %v552
      %v577 = vpack.c.b16 %v555, %v553
      %v578 = vpack.c.b16 %v558, %v556
      %v579 = vpack.c.b16 %v559, %v557
      %v580 = vpack.c.b16 %v562, %v560
      %v581 = vpack.c.b16 %v563, %v561
      %v582 = vpack.c.b16 %v566, %v564
      %v583 = vpack.c.b16 %v567, %v565
      %600 = vmatprep.subr.bf16.mxu0 %v569
      %601 = vmatpush1.bf16.msra.mxu0 %v568
      %602 = vmatprep.subr.bf16.mxu0 %v571
      %603 = vmatpush1.bf16.msra.mxu0 %v570
      %604 = vmatprep.subr.bf16.mxu0 %v573
      %605 = vmatpush1.bf16.msra.mxu0 %v572
      %606 = vmatprep.subr.bf16.mxu0 %v575
      %607 = vmatpush1.bf16.msra.mxu0 %v574
      %608 = vmatprep.subr.bf16.mxu0 %v577
      %609 = vmatpush1.bf16.msra.mxu0 %v576
      %610 = vmatprep.subr.bf16.mxu0 %v579
      %611 = vmatpush1.bf16.msra.mxu0 %v578
      %612 = vmatprep.subr.bf16.mxu0 %v581
      %613 = vmatpush1.bf16.msra.mxu0 %v580
      %614 = vmatprep.subr.bf16.mxu0 %v583
      %615 = vmatpush1.bf16.msra.mxu0 %v582
      %616 = vmatprep.subr.bf16.mxu0 0
      %617 = vmatpush1.bf16.msra.mxu0 0
      %618 = vmatprep.subr.bf16.mxu0 0
      %619 = vmatpush1.bf16.msra.mxu0 0
      %620 = vmatprep.subr.bf16.mxu0 0
      %621 = vmatpush1.bf16.msra.mxu0 0
      %622 = vmatprep.subr.bf16.mxu0 0
      %623 = vmatpush1.bf16.msra.mxu0 0
      %624 = vmatprep.subr.bf16.mxu0 0
      %625 = vmatpush1.bf16.msra.mxu0 0
      %626 = vmatprep.subr.bf16.mxu0 0
      %627 = vmatpush1.bf16.msra.mxu0 0
      %628 = vmatprep.subr.bf16.mxu0 0
      %629 = vmatpush1.bf16.msra.mxu0 0
      %630 = vmatprep.subr.bf16.mxu0 0
      %631 = vmatpush1.bf16.msra.mxu0 0
      %632 = vmatprep.mubr.bf16.mxu0 0
      %633 = vmatmul.mubr.bf16.gmra.mrb[0].mxu0 %v222
      %v634 = vpop.f32.mrb[0].mxu0
      %v635 = vadd.f32 0.0, %v634
      %v636 = vpop.f32.mrb[0].mxu0
      %v637 = vadd.f32 0.0, %v636
      %v638 = vpop.f32.mrb[0].mxu0
      %v639 = vadd.f32 0.0, %v638
      %v640 = vpop.f32.mrb[0].mxu0
      %v641 = vadd.f32 0.0, %v640
      %642 = vmatprep.mubr.bf16.mxu0 0
      %643 = vmatmul.mubr.bf16.gmra.mrb[0].mxu0 %v518
      %v644 = vpop.f32.mrb[0].mxu0
      %v645 = vadd.f32 0.0, %v644
      %v646 = vpop.f32.mrb[0].mxu0
      %v647 = vadd.f32 0.0, %v646
      %v648 = vpop.f32.mrb[0].mxu0
      %v649 = vadd.f32 0.0, %v648
      %v650 = vpop.f32.mrb[0].mxu0
      %v651 = vadd.f32 0.0, %v650
      %652 = vdwg.mxu0
      %v653 = vadd.f32 %v479, %v635
      %v654 = vadd.f32 %v481, %v637
      %v655 = vadd.f32 %v483, %v639
      %v656 = vadd.f32 %v485, %v641
      %v657 = vadd.f32 %v489, %v645
      %v658 = vadd.f32 %v491, %v647
      %v659 = vadd.f32 %v493, %v649
      %v660 = vadd.f32 %v495, %v651
      %v661 = vmax.f32 %v653, %v657
      %v662 = vmax.f32 %v654, %v658
      %v663 = vmax.f32 %v655, %v659
      %v664 = vmax.f32 %v656, %v660
      %v665 = vmax.f32 %v661, %v662
      %v666 = vmax.f32 %v663, %v664
      %v667 = vld [vmem:[%s2] sm:$0x1]
      %v669 = vlaneseq
      %v670 = vshrl.u32 %v669, 7
      %v671 = vsub.s32 0, %v670
      %v672 = vrot.slane %v667, %v671
      %v674 = vadd.f32 %v665, %v672
      %v675 = vadd.f32 %v666, %v672
      %v676 = vmax.f32 %v674, 0.0
      %v677 = vmax.f32 %v675, 0.0
      %v678 = vpack.c.bf16 %v677, %v676
      %v680 = vunpack.c.l.b16 %v678
      %v681 = vunpack.c.h.b16 %v678
      %v682 = vpack.c.b16 %v680, %v680
      %v683 = vpack.c.b16 %v681, %v681
      %686 = vst [vmem:[%s170] sm:$0xf] %v682
      %687 = vst [vmem:[%s170 + $0x4] sm:$0xf] %v683
      %p688 = scmp.lt.s32.totalorder %s14, 1
      %s689 = scalar_select %p688, %s14, 1
      %s690 = smul.addr %s689, 2
      %s691 = smul.addr %s690, 4
      %s692 = scalar_lea.vmem %s3, %s691
      // Predicated region
      $region33: #{genre_classifier_forward.3} parent=31 // pred_check
        %p693 = pneg %p100
      $region34: #{genre_classifier_forward.3} parent=31 // pred_check_branch
        %695 = sbr.rel (%p693) target = $region36
      $region35: #{genre_classifier_forward.3} parent=31 // pred_region
        _
      $region36: #{genre_classifier_forward.3} parent=31 // pred_fallthru
        _
    $region32: #{genre_classifier_forward.3} parent=5 // pred_fallthru
      _
    %p696 = scmp.le.s32.totalorder 2, %s9
    // Predicated region
    $region37: #{genre_classifier_forward.3} parent=5 // pred_check
      %p697 = pneg %p696
    $region38: #{genre_classifier_forward.3} parent=5 // pred_check_branch
      %699 = sbr.rel (%p697) target = $region40
    $region39: #{genre_classifier_forward.3} parent=5 // pred_region
      %s700 = ssub.s32 %s9, 2
      // Predicated region
      $region41: #{genre_classifier_forward.3} parent=39 // pred_check
        %p701 = pneg %p106
      $region42: #{genre_classifier_forward.3} parent=39 // pred_check_branch
        %703 = sbr.rel (%p701) target = $region44
      $region43: #{genre_classifier_forward.3} parent=39 // pred_region
        %p704 = scmp.lt.s32.totalorder %s15, 1
        %s705 = scalar_select %p704, %s15, 1
        %s706 = smul.addr %s705, 2
        %s707 = smul.addr %s706, 4
        %s708 = scalar_lea.vmem %s3, %s707
      $region44: #{genre_classifier_forward.3} parent=39 // pred_fallthru
        _
    $region40: #{genre_classifier_forward.3} parent=5 // pred_fallthru
      _
  $region6: #{genre_classifier_forward.3} parent=0 // loop_footer
    %s13 = sadd.s32 1, %s9
  $region7: #{genre_classifier_forward.3} parent=0 // loop_footer_branch
    %8 = sbr.rel target = $region3
  $region8: #{genre_classifier_forward.3} parent=0 // loop_exit
    _

// kernel: genre_classifier_forward.4
$region0: #{genre_classifier_forward.4}
  #allocation0 [shape = 'u32[]', space=smem, size = 0x4, offset = 0x4, fixed_abs, tag = 'smem constant byte address 0x4 - core index']
  #allocation1 [shape = 'u32[144,128]{1,0:T(1,128)}', space=vmem, size = 0x12000, scoped, tag = 'internal scratch']
  %s0 = inlined_call_operand.vmem [shape: bf16[2,4,16,256], index: 0, kind: input, shape index: {}]
  %s1 = inlined_call_operand.vmem [shape: bf16[3,256,256], index: 1, kind: input, shape index: {}]
  %s2 = inlined_call_operand.vmem [shape: f32[1,128], index: 2, kind: input, shape index: {}]
  %s3 = inlined_call_operand.vmem [shape: bf16[2,16,128], index: 3, kind: output, shape index: {}]
  %s4 = sld [smem:[#allocation0]]
  $region45: #{genre_classifier_forward.4} parent=0
    _
  %s6 = ssub.s32 1, %s4
  %s7 = scalar_select 0, %s6, %s4
  loop: start=0, step=1, limit=4
  $region2: #{genre_classifier_forward.4} parent=0 // loop_pre_header
    _
  $region3: #{genre_classifier_forward.4} parent=0 // loop_header
    %s9 = sphi 0, %s13
    %p10 = scmp.ge.s32.totalorder %s9, 4
    %s19 = sphi 0, %s21
    %s22 = sphi 0, %s19
    %s23 = sphi 0, %s22
    %s39 = sphi 0, %s23
    %s43 = sphi 0, %s43
    %s45 = sphi 0, %s43
    %s46 = sphi 0, %s45
    %s60 = sphi 0, %s46
    %s64 = sphi 0, %s64
    %s66 = sphi 0, %s64
    %s67 = sphi 0, %s66
    %s81 = sphi 0, %s67
    %s87 = sphi 0, %s89
    %s90 = sphi 0, %s87
    %s91 = sphi 0, %s90
    %s107 = sphi 0, %s91
  $region4: #{genre_classifier_forward.4} parent=0 // loop_header_branch
    %12 = sbr.rel (%p10) target = $region8
  $region5: #{genre_classifier_forward.4} parent=0 // loop_body
    %s14 = ssub.s32 %s9, 1
    %s15 = ssub.s32 %s9, 2
    %s16 = sadd.s32 %s9, 1
    %s17 = ssub.s32 %s9, %s16
    %p18 = scmp.eq.s32.totalorder %s17, 0
    %s20 = sadd.s32 %s19, 1
    %s21 = scalar_select %p18, %s19, %s20
    %p24 = pneg %p18
    %p25 = scmp.eq.s32.totalorder %s9, 1
    %p26 = por %p24, %p25
    %p27 = scmp.ne.s32.totalorder %s19, %s22
    %p28 = scmp.eq.s32.totalorder %s9, 0
    %p29 = por %p27, %p28
    %p30 = scmp.ne.s32.totalorder %s19, %s22
    %p31 = scmp.eq.s32.totalorder %s14, 1
    %p32 = por %p30, %p31
    %p33 = scmp.ne.s32.totalorder %s22, %s23
    %p34 = scmp.eq.s32.totalorder %s14, 0
    %p35 = por %p33, %p34
    %p36 = scmp.ne.s32.totalorder %s22, %s23
    %p37 = scmp.eq.s32.totalorder %s15, 1
    %p38 = por %p36, %p37
    %p40 = scmp.ne.s32.totalorder %s23, %s39
    %p41 = scmp.eq.s32.totalorder %s15, 0
    %p42 = por %p40, %p41
    %s44 = sadd.s32 %s43, 1
    %p47 = scmp.eq.s32.totalorder %s9, 1
    %p48 = scmp.ne.s32.totalorder %s43, %s45
    %p49 = scmp.eq.s32.totalorder %s9, 0
    %p50 = por %p48, %p49
    %p51 = scmp.ne.s32.totalorder %s43, %s45
    %p52 = scmp.eq.s32.totalorder %s14, 1
    %p53 = por %p51, %p52
    %p54 = scmp.ne.s32.totalorder %s45, %s46
    %p55 = scmp.eq.s32.totalorder %s14, 0
    %p56 = por %p54, %p55
    %p57 = scmp.ne.s32.totalorder %s45, %s46
    %p58 = scmp.eq.s32.totalorder %s15, 1
    %p59 = por %p57, %p58
    %p61 = scmp.ne.s32.totalorder %s46, %s60
    %p62 = scmp.eq.s32.totalorder %s15, 0
    %p63 = por %p61, %p62
    %s65 = sadd.s32 %s64, 1
    %p68 = scmp.eq.s32.totalorder %s9, 1
    %p69 = scmp.ne.s32.totalorder %s64, %s66
    %p70 = scmp.eq.s32.totalorder %s9, 0
    %p71 = por %p69, %p70
    %p72 = scmp.ne.s32.totalorder %s64, %s66
    %p73 = scmp.eq.s32.totalorder %s14, 1
    %p74 = por %p72, %p73
    %p75 = scmp.ne.s32.totalorder %s66, %s67
    %p76 = scmp.eq.s32.totalorder %s14, 0
    %p77 = por %p75, %p76
    %p78 = scmp.ne.s32.totalorder %s66, %s67
    %p79 = scmp.eq.s32.totalorder %s15, 1
    %p80 = por %p78, %p79
    %p82 = scmp.ne.s32.totalorder %s67, %s81
    %p83 = scmp.eq.s32.totalorder %s15, 0
    %p84 = por %p82, %p83
    %s85 = ssub.s32 %s9, %s16
    %p86 = scmp.eq.s32.totalorder %s85, 0
    %s88 = sadd.s32 %s87, 1
    %s89 = scalar_select %p86, %s87, %s88
    %p92 = pneg %p86
    %p93 = scmp.eq.s32.totalorder %s9, 1
    %p94 = por %p92, %p93
    %p95 = scmp.ne.s32.totalorder %s87, %s90
    %p96 = scmp.eq.s32.totalorder %s9, 0
    %p97 = por %p95, %p96
    %p98 = scmp.ne.s32.totalorder %s87, %s90
    %p99 = scmp.eq.s32.totalorder %s14, 1
    %p100 = por %p98, %p99
    %p101 = scmp.ne.s32.totalorder %s90, %s91
    %p102 = scmp.eq.s32.totalorder %s14, 0
    %p103 = por %p101, %p102
    %p104 = scmp.ne.s32.totalorder %s90, %s91
    %p105 = scmp.eq.s32.totalorder %s15, 1
    %p106 = por %p104, %p105
    %p108 = scmp.ne.s32.totalorder %s91, %s107
    %p109 = scmp.eq.s32.totalorder %s15, 0
    %p110 = por %p108, %p109
    %p111 = scmp.le.s32.totalorder 1, %s9
    %p112 = scmp.lt.s32.totalorder %s9, 3
    %p113 = pnand %p111, %p112
    %p114 = pneg %p113
    // Predicated region
    $region9: #{genre_classifier_forward.4} parent=5 // pred_check
      _
    $region10: #{genre_classifier_forward.4} parent=5 // pred_check_branch
      %116 = sbr.rel (%p113) target = $region12
    $region11: #{genre_classifier_forward.4} parent=5 // pred_region
      %s117 = ssub.s32 %s9, 1
      // Predicated region
      $region13: #{genre_classifier_forward.4} parent=11 // pred_check
        %p118 = pneg %p56
      $region14: #{genre_classifier_forward.4} parent=11 // pred_check_branch
        %120 = sbr.rel (%p118) target = $region16
      $region15: #{genre_classifier_forward.4} parent=11 // pred_region
        _
      $region16: #{genre_classifier_forward.4} parent=11 // pred_fallthru
        _
      // Predicated region
      $region17: #{genre_classifier_forward.4} parent=11 // pred_check
        %p121 = pneg %p77
      $region18: #{genre_classifier_forward.4} parent=11 // pred_check_branch
        %123 = sbr.rel (%p121) target = $region20
      $region19: #{genre_classifier_forward.4} parent=11 // pred_region
        _
      $region20: #{genre_classifier_forward.4} parent=11 // pred_fallthru
        _
    $region12: #{genre_classifier_forward.4} parent=5 // pred_fallthru
      _
    %p124 = scmp.lt.s32.totalorder %s9, 2
    // Predicated region
    $region21: #{genre_classifier_forward.4} parent=5 // pred_check
      %p125 = pneg %p124
    $region22: #{genre_classifier_forward.4} parent=5 // pred_check_branch
      %127 = sbr.rel (%p125) target = $region24
    $region23: #{genre_classifier_forward.4} parent=5 // pred_region
      // Predicated region
      $region25: #{genre_classifier_forward.4} parent=23 // pred_check
        %p128 = pneg %p29
      $region26: #{genre_classifier_forward.4} parent=23 // pred_check_branch
        %130 = sbr.rel (%p128) target = $region28
      $region27: #{genre_classifier_forward.4} parent=23 // pred_region
        %p131 = scmp.lt.s32.totalorder %s9, 1
        %s132 = scalar_select %p131, %s9, 1
        %s133 = smul.addr %s132, 16
        %s134 = smul.addr %s133, 4
        %s135 = scalar_lea.vmem %s0, %s134
      $region28: #{genre_classifier_forward.4} parent=23 // pred_fallthru
        _
    $region24: #{genre_classifier_forward.4} parent=5 // pred_fallthru
      _
    %p136 = scmp.le.s32.totalorder 1, %s9
    %p137 = scmp.lt.s32.totalorder %s9, 3
    %p138 = pnand %p136, %p137
    %p139 = pneg %p138
    // Predicated region
    $region29: #{genre_classifier_forward.4} parent=5 // pred_check
      _
    $region30: #{genre_classifier_forward.4} parent=5 // pred_check_branch
      %141 = sbr.rel (%p138) target = $region32
    $region31: #{genre_classifier_forward.4} parent=5 // pred_region
      %s142 = ssub.s32 %s9, 1
      %p143 = scmp.lt.s32.totalorder %s14, 1
      %s144 = scalar_select %p143, %s14, 1
      %s145 = smul.addr %s144, 16
      %s146 = smul.addr %s145, 4
      %s147 = scalar_lea.vmem %s0, %s146
      %p148 = pneg %p35
      %p149 = pneg %p32
      %p150 = pneg %p56
      %p151 = pneg %p53
      %p152 = pneg %p77
      %p153 = pneg %p74
      %p154 = pneg %p103
      %p155 = pneg %p100
      %p156 = scmp.lt.s32.totalorder %s14, 1
      %s157 = scalar_select %p156, %s14, 1
      %s158 = smul.addr %s157, 2
      %s159 = smul.addr %s158, 4
      %s160 = scalar_lea.vmem %s3, %s159
      %p161 = scmp.lt.s32.totalorder %s14, 1
      %s162 = scalar_select %p161, %s14, 1
      %s163 = smul.addr %s162, 16
      %s164 = smul.addr %s163, 4
      %s165 = scalar_lea.vmem %s0, %s164
      %p166 = scmp.lt.s32.totalorder %s14, 1
      %s167 = scalar_select %p166, %s14, 1
      %s168 = smul.addr %s167, 2
      %s169 = smul.addr %s168, 4
      %s170 = scalar_lea.vmem %s3, %s169
      %v171 = vld [vmem:[%s165] sm:$0xff]
      %v172 = vld [vmem:[%s165 + $0x8] sm:$0xff]
      %v173 = vld [vmem:[%s165 + $0x10] sm:$0xff]
      %v174 = vld [vmem:[%s165 + $0x18] sm:$0xff]
      %v175 = vld [vmem:[%s165 + $0x20] sm:$0xff]
      %v176 = vld [vmem:[%s165 + $0x28] sm:$0xff]
      %v177 = vld [vmem:[%s165 + $0x30] sm:$0xff]
      %v178 = vld [vmem:[%s165 + $0x38] sm:$0xff]
      %v179 = vld [vmem:[%s1] sm:$0xff]
      %v180 = vld [vmem:[%s1 + $0x8] sm:$0xff]
      %v181 = vld [vmem:[%s1 + $0x10] sm:$0xff]
      %v182 = vld [vmem:[%s1 + $0x18] sm:$0xff]
      %v183 = vld [vmem:[%s1 + $0x20] sm:$0xff]
      %v184 = vld [vmem:[%s1 + $0x28] sm:$0xff]
      %v185 = vld [vmem:[%s1 + $0x30] sm:$0xff]
      %v186 = vld [vmem:[%s1 + $0x38] sm:$0xff]
      %v187 = vld [vmem:[%s1 + $0x40] sm:$0xff]
      %v188 = vld [vmem:[%s1 + $0x48] sm:$0xff]
      %v189 = vld [vmem:[%s1 + $0x50] sm:$0xff]
      %v190 = vld [vmem:[%s1 + $0x58] sm:$0xff]
      %v191 = vld [vmem:[%s1 + $0x60] sm:$0xff]
      %v192 = vld [vmem:[%s1 + $0x68] sm:$0xff]
      %v193 = vld [vmem:[%s1 + $0x70] sm:$0xff]
      %v194 = vld [vmem:[%s1 + $0x78] sm:$0xff]
      %v195 = vld [vmem:[%s1 + $0x80] sm:$0xff]
      %v196 = vld [vmem:[%s1 + $0x88] sm:$0xff]
      %v197 = vld [vmem:[%s1 + $0x90] sm:$0xff]
      %v198 = vld [vmem:[%s1 + $0x98] sm:$0xff]
      %v199 = vld [vmem:[%s1 + $0xa0] sm:$0xff]
      %v200 = vld [vmem:[%s1 + $0xa8] sm:$0xff]
      %v201 = vld [vmem:[%s1 + $0xb0] sm:$0xff]
      %v202 = vld [vmem:[%s1 + $0xb8] sm:$0xff]
      %v203 = vld [vmem:[%s1 + $0xc0] sm:$0xff]
      %v204 = vld [vmem:[%s1 + $0xc8] sm:$0xff]
      %v205 = vld [vmem:[%s1 + $0xd0] sm:$0xff]
      %v206 = vld [vmem:[%s1 + $0xd8] sm:$0xff]
      %v207 = vld [vmem:[%s1 + $0xe0] sm:$0xff]
      %v208 = vld [vmem:[%s1 + $0xe8] sm:$0xff]
      %v209 = vld [vmem:[%s1 + $0xf0] sm:$0xff]
      %v210 = vld [vmem:[%s1 + $0xf8] sm:$0xff]
      %s211 = scalar_lea.vmem %s1, 256
      %v212 = vld [vmem:[%s211] sm:$0xff]
      %v213 = vld [vmem:[%s211 + $0x8] sm:$0xff]
      %v214 = vld [vmem:[%s211 + $0x10] sm:$0xff]
      %v215 = vld [vmem:[%s211 + $0x18] sm:$0xff]
      %v216 = vld [vmem:[%s211 + $0x20] sm:$0xff]
      %v217 = vld [vmem:[%s211 + $0x28] sm:$0xff]
      %v218 = vld [vmem:[%s211 + $0x30] sm:$0xff]
      %v219 = vld [vmem:[%s211 + $0x38] sm:$0xff]
      %v220 = vld [vmem:[%s211 + $0x40] sm:$0xff]
      %v221 = vld [vmem:[%s211 + $0x48] sm:$0xff]
      %v222 = vld [vmem:[%s211 + $0x50] sm:$0xff]
      %v223 = vld [vmem:[%s211 + $0x58] sm:$0xff]
      %v224 = vld [vmem:[%s211 + $0x60] sm:$0xff]
      %v225 = vld [vmem:[%s211 + $0x68] sm:$0xff]
      %v226 = vld [vmem:[%s211 + $0x70] sm:$0xff]
      %v227 = vld [vmem:[%s211 + $0x78] sm:$0xff]
      %v228 = vld [vmem:[%s211 + $0x80] sm:$0xff]
      %v229 = vld [vmem:[%s211 + $0x88] sm:$0xff]
      %v230 = vld [vmem:[%s211 + $0x90] sm:$0xff]
      %v231 = vld [vmem:[%s211 + $0x98] sm:$0xff]
      %v232 = vld [vmem:[%s211 + $0xa0] sm:$0xff]
      %v233 = vld [vmem:[%s211 + $0xa8] sm:$0xff]
      %v234 = vld [vmem:[%s211 + $0xb0] sm:$0xff]
      %v235 = vld [vmem:[%s211 + $0xb8] sm:$0xff]
      %v236 = vld [vmem:[%s211 + $0xc0] sm:$0xff]
      %v237 = vld [vmem:[%s211 + $0xc8] sm:$0xff]
      %v238 = vld [vmem:[%s211 + $0xd0] sm:$0xff]
      %v239 = vld [vmem:[%s211 + $0xd8] sm:$0xff]
      %v240 = vld [vmem:[%s211 + $0xe0] sm:$0xff]
      %v241 = vld [vmem:[%s211 + $0xe8] sm:$0xff]
      %v242 = vld [vmem:[%s211 + $0xf0] sm:$0xff]
      %v243 = vld [vmem:[%s211 + $0xf8] sm:$0xff]
      %v248 = vunpack.c.l.b16 %v173
      %v249 = vunpack.c.h.b16 %v173
      %v250 = vunpack.c.l.b16 %v174
      %v251 = vunpack.c.h.b16 %v174
      %v252 = vunpack.c.l.b16 %v175
      %v253 = vunpack.c.h.b16 %v175
      %v254 = vunpack.c.l.b16 %v176
      %v255 = vunpack.c.h.b16 %v176
      %v256 = vpack.c.b16 %v250, %v248
      %v257 = vpack.c.b16 %v251, %v249
      %v258 = vpack.c.b16 %v254, %v252
      %v259 = vpack.c.b16 %v255, %v253
      %v296 = vunpack.c.l.b16 %v212
      %v297 = vunpack.c.h.b16 %v212
      %v298 = vunpack.c.l.b16 %v213
      %v299 = vunpack.c.h.b16 %v213
      %v300 = vunpack.c.l.b16 %v214
      %v301 = vunpack.c.h.b16 %v214
      %v302 = vunpack.c.l.b16 %v215
      %v303 = vunpack.c.h.b16 %v215
      %v304 = vunpack.c.l.b16 %v216
      %v305 = vunpack.c.h.b16 %v216
      %v306 = vunpack.c.l.b16 %v217
      %v307 = vunpack.c.h.b16 %v217
      %v308 = vunpack.c.l.b16 %v218
      %v309 = vunpack.c.h.b16 %v218
      %v310 = vunpack.c.l.b16 %v219
      %v311 = vunpack.c.h.b16 %v219
      %v312 = vunpack.c.l.b16 %v220
      %v313 = vunpack.c.h.b16 %v220
      %v314 = vunpack.c.l.b16 %v221
      %v315 = vunpack.c.h.b16 %v221
      %v316 = vunpack.c.l.b16 %v222
      %v317 = vunpack.c.h.b16 %v222
      %v318 = vunpack.c.l.b16 %v223
      %v319 = vunpack.c.h.b16 %v223
      %v320 = vunpack.c.l.b16 %v224
      %v321 = vunpack.c.h.b16 %v224
      %v322 = vunpack.c.l.b16 %v225
      %v323 = vunpack.c.h.b16 %v225
      %v324 = vunpack.c.l.b16 %v226
      %v325 = vunpack.c.h.b16 %v226
      %v326 = vunpack.c.l.b16 %v227
      %v327 = vunpack.c.h.b16 %v227
      %v328 = vunpack.c.l.b16 %v228
      %v329 = vunpack.c.h.b16 %v228
      %v330 = vunpack.c.l.b16 %v229
      %v331 = vunpack.c.h.b16 %v229
      %v332 = vunpack.c.l.b16 %v230
      %v333 = vunpack.c.h.b16 %v230
      %v334 = vunpack.c.l.b16 %v231
      %v335 = vunpack.c.h.b16 %v231
      %v336 = vunpack.c.l.b16 %v232
      %v337 = vunpack.c.h.b16 %v232
      %v338 = vunpack.c.l.b16 %v233
      %v339 = vunpack.c.h.b16 %v233
      %v340 = vunpack.c.l.b16 %v234
      %v341 = vunpack.c.h.b16 %v234
      %v342 = vunpack.c.l.b16 %v235
      %v343 = vunpack.c.h.b16 %v235
      %v344 = vunpack.c.l.b16 %v236
      %v345 = vunpack.c.h.b16 %v236
      %v346 = vunpack.c.l.b16 %v237
      %v347 = vunpack.c.h.b16 %v237
      %v348 = vunpack.c.l.b16 %v238
      %v349 = vunpack.c.h.b16 %v238
      %v350 = vunpack.c.l.b16 %v239
      %v351 = vunpack.c.h.b16 %v239
      %v352 = vunpack.c.l.b16 %v240
      %v353 = vunpack.c.h.b16 %v240
      %v354 = vunpack.c.l.b16 %v241
      %v355 = vunpack.c.h.b16 %v241
      %v356 = vunpack.c.l.b16 %v242
      %v357 = vunpack.c.h.b16 %v242
      %v358 = vunpack.c.l.b16 %v243
      %v359 = vunpack.c.h.b16 %v243
      %v360 = vpack.c.b16 %v298, %v296
      %v361 = vpack.c.b16 %v299, %v297
      %v362 = vpack.c.b16 %v302, %v300
      %v363 = vpack.c.b16 %v303, %v301
      %v364 = vpack.c.b16 %v306, %v304
      %v365 = vpack.c.b16 %v307, %v305
      %v366 = vpack.c.b16 %v310, %v308
      %v367 = vpack.c.b16 %v311, %v309
      %v368 = vpack.c.b16 %v314, %v312
      %v369 = vpack.c.b16 %v315, %v313
      %v370 = vpack.c.b16 %v318, %v316
      %v371 = vpack.c.b16 %v319, %v317
      %v372 = vpack.c.b16 %v322, %v320
      %v373 = vpack.c.b16 %v323, %v321
      %v374 = vpack.c.b16 %v326, %v324
      %v375 = vpack.c.b16 %v327, %v325
      %v376 = vpack.c.b16 %v330, %v328
      %v377 = vpack.c.b16 %v331, %v329
      %v378 = vpack.c.b16 %v334, %v332
      %v379 = vpack.c.b16 %v335, %v333
      %v380 = vpack.c.b16 %v338, %v336
      %v381 = vpack.c.b16 %v339, %v337
      %v382 = vpack.c.b16 %v342, %v340
      %v383 = vpack.c.b16 %v343, %v341
      %v384 = vpack.c.b16 %v346, %v344
      %v385 = vpack.c.b16 %v347, %v345
      %v386 = vpack.c.b16 %v350, %v348
      %v387 = vpack.c.b16 %v351, %v349
      %v388 = vpack.c.b16 %v354, %v352
      %v389 = vpack.c.b16 %v355, %v353
      %v390 = vpack.c.b16 %v358, %v356
      %v391 = vpack.c.b16 %v359, %v357
      %424 = vmatprep.subr.bf16.mxu0 %v361
      %425 = vmatpush1.bf16.msra.mxu0 %v360
      %426 = vmatprep.subr.bf16.mxu0 %v363
      %427 = vmatpush1.bf16.msra.mxu0 %v362
      %428 = vmatprep.subr.bf16.mxu0 %v365
      %429 = vmatpush1.bf16.msra.mxu0 %v364
      %430 = vmatprep.subr.bf16.mxu0 %v367
      %431 = vmatpush1.bf16.msra.mxu0 %v366
      %432 = vmatprep.subr.bf16.mxu0 %v369
      %433 = vmatpush1.bf16.msra.mxu0 %v368
      %434 = vmatprep.subr.bf16.mxu0 %v371
      %435 = vmatpush1.bf16.msra.mxu0 %v370
      %436 = vmatprep.subr.bf16.mxu0 %v373
      %437 = vmatpush1.bf16.msra.mxu0 %v372
      %438 = vmatprep.subr.bf16.mxu0 %v375
      %439 = vmatpush1.bf16.msra.mxu0 %v374
      %440 = vmatprep.subr.bf16.mxu0 %v377
      %441 = vmatpush1.bf16.msra.mxu0 %v376
      %442 = vmatprep.subr.bf16.mxu0 %v379
      %443 = vmatpush1.bf16.msra.mxu0 %v378
      %444 = vmatprep.subr.bf16.mxu0 %v381
      %445 = vmatpush1.bf16.msra.mxu0 %v380
      %446 = vmatprep.subr.bf16.mxu0 %v383
      %447 = vmatpush1.bf16.msra.mxu0 %v382
      %448 = vmatprep.subr.bf16.mxu0 %v385
      %449 = vmatpush1.bf16.msra.mxu0 %v384
      %450 = vmatprep.subr.bf16.mxu0 %v387
      %451 = vmatpush1.bf16.msra.mxu0 %v386
      %452 = vmatprep.subr.bf16.mxu0 %v389
      %453 = vmatpush1.bf16.msra.mxu0 %v388
      %454 = vmatprep.subr.bf16.mxu0 %v391
      %455 = vmatpush1.bf16.msra.mxu0 %v390
      %456 = vmatprep.mubr.bf16.mxu0 %v257
      %457 = vmatmul.mubr.bf16.gmra.mrb[0].mxu0 %v256
      %v458 = vpop.f32.mrb[0].mxu0
      %v459 = vadd.f32 0.0, %v458
      %v460 = vpop.f32.mrb[0].mxu0
      %v461 = vadd.f32 0.0, %v460
      %v462 = vpop.f32.mrb[0].mxu0
      %v463 = vadd.f32 0.0, %v462
      %v464 = vpop.f32.mrb[0].mxu0
      %v465 = vadd.f32 0.0, %v464
      %466 = vmatprep.mubr.bf16.mxu0 %v259
      %467 = vmatmul.mubr.bf16.gmra.mrb[0].mxu0 %v258
      %v468 = vpop.f32.mrb[0].mxu0
      %v469 = vadd.f32 0.0, %v468
      %v470 = vpop.f32.mrb[0].mxu0
      %v471 = vadd.f32 0.0, %v470
      %v472 = vpop.f32.mrb[0].mxu0
      %v473 = vadd.f32 0.0, %v472
      %v474 = vpop.f32.mrb[0].mxu0
      %v475 = vadd.f32 0.0, %v474
      %476 = vdwg.mxu0
      %v479 = vunpack.c.l.b16 %v171
      %v480 = vunpack.c.h.b16 %v171
      %v481 = vunpack.c.l.b16 %v172
      %v482 = vunpack.c.h.b16 %v172
      %v483 = vpack.c.b16 %v481, %v479
      %v484 = vpack.c.b16 %v482, %v480
      %v519 = vunpack.c.l.b16 %v179
      %v520 = vunpack.c.h.b16 %v179
      %v521 = vunpack.c.l.b16 %v180
      %v522 = vunpack.c.h.b16 %v180
      %v523 = vunpack.c.l.b16 %v181
      %v524 = vunpack.c.h.b16 %v181
      %v525 = vunpack.c.l.b16 %v182
      %v526 = vunpack.c.h.b16 %v182
      %v527 = vunpack.c.l.b16 %v183
      %v528 = vunpack.c.h.b16 %v183
      %v529 = vunpack.c.l.b16 %v184
      %v530 = vunpack.c.h.b16 %v184
      %v531 = vunpack.c.l.b16 %v185
      %v532 = vunpack.c.h.b16 %v185
      %v533 = vunpack.c.l.b16 %v186
      %v534 = vunpack.c.h.b16 %v186
      %v535 = vunpack.c.l.b16 %v187
      %v536 = vunpack.c.h.b16 %v187
      %v537 = vunpack.c.l.b16 %v188
      %v538 = vunpack.c.h.b16 %v188
      %v539 = vunpack.c.l.b16 %v189
      %v540 = vunpack.c.h.b16 %v189
      %v541 = vunpack.c.l.b16 %v190
      %v542 = vunpack.c.h.b16 %v190
      %v543 = vunpack.c.l.b16 %v191
      %v544 = vunpack.c.h.b16 %v191
      %v545 = vunpack.c.l.b16 %v192
      %v546 = vunpack.c.h.b16 %v192
      %v547 = vunpack.c.l.b16 %v193
      %v548 = vunpack.c.h.b16 %v193
      %v549 = vunpack.c.l.b16 %v194
      %v550 = vunpack.c.h.b16 %v194
      %v551 = vunpack.c.l.b16 %v195
      %v552 = vunpack.c.h.b16 %v195
      %v553 = vunpack.c.l.b16 %v196
      %v554 = vunpack.c.h.b16 %v196
      %v555 = vunpack.c.l.b16 %v197
      %v556 = vunpack.c.h.b16 %v197
      %v557 = vunpack.c.l.b16 %v198
      %v558 = vunpack.c.h.b16 %v198
      %v559 = vunpack.c.l.b16 %v199
      %v560 = vunpack.c.h.b16 %v199
      %v561 = vunpack.c.l.b16 %v200
      %v562 = vunpack.c.h.b16 %v200
      %v563 = vunpack.c.l.b16 %v201
      %v564 = vunpack.c.h.b16 %v201
      %v565 = vunpack.c.l.b16 %v202
      %v566 = vunpack.c.h.b16 %v202
      %v567 = vunpack.c.l.b16 %v203
      %v568 = vunpack.c.h.b16 %v203
      %v569 = vunpack.c.l.b16 %v204
      %v570 = vunpack.c.h.b16 %v204
      %v571 = vunpack.c.l.b16 %v205
      %v572 = vunpack.c.h.b16 %v205
      %v573 = vunpack.c.l.b16 %v206
      %v574 = vunpack.c.h.b16 %v206
      %v575 = vunpack.c.l.b16 %v207
      %v576 = vunpack.c.h.b16 %v207
      %v577 = vunpack.c.l.b16 %v208
      %v578 = vunpack.c.h.b16 %v208
      %v579 = vunpack.c.l.b16 %v209
      %v580 = vunpack.c.h.b16 %v209
      %v581 = vunpack.c.l.b16 %v210
      %v582 = vunpack.c.h.b16 %v210
      %v583 = vpack.c.b16 %v521, %v519
      %v584 = vpack.c.b16 %v522, %v520
      %v585 = vpack.c.b16 %v525, %v523
      %v586 = vpack.c.b16 %v526, %v524
      %v587 = vpack.c.b16 %v529, %v527
      %v588 = vpack.c.b16 %v530, %v528
      %v589 = vpack.c.b16 %v533, %v531
      %v590 = vpack.c.b16 %v534, %v532
      %v591 = vpack.c.b16 %v537, %v535
      %v592 = vpack.c.b16 %v538, %v536
      %v593 = vpack.c.b16 %v541, %v539
      %v594 = vpack.c.b16 %v542, %v540
      %v595 = vpack.c.b16 %v545, %v543
      %v596 = vpack.c.b16 %v546, %v544
      %v597 = vpack.c.b16 %v549, %v547
      %v598 = vpack.c.b16 %v550, %v548
      %v599 = vpack.c.b16 %v553, %v551
      %v600 = vpack.c.b16 %v554, %v552
      %v601 = vpack.c.b16 %v557, %v555
      %v602 = vpack.c.b16 %v558, %v556
      %v603 = vpack.c.b16 %v561, %v559
      %v604 = vpack.c.b16 %v562, %v560
      %v605 = vpack.c.b16 %v565, %v563
      %v606 = vpack.c.b16 %v566, %v564
      %v607 = vpack.c.b16 %v569, %v567
      %v608 = vpack.c.b16 %v570, %v568
      %v609 = vpack.c.b16 %v573, %v571
      %v610 = vpack.c.b16 %v574, %v572
      %v611 = vpack.c.b16 %v577, %v575
      %v612 = vpack.c.b16 %v578, %v576
      %v613 = vpack.c.b16 %v581, %v579
      %v614 = vpack.c.b16 %v582, %v580
      %647 = vmatprep.subr.bf16.mxu0 %v584
      %648 = vmatpush1.bf16.msra.mxu0 %v583
      %649 = vmatprep.subr.bf16.mxu0 %v586
      %650 = vmatpush1.bf16.msra.mxu0 %v585
      %651 = vmatprep.subr.bf16.mxu0 %v588
      %652 = vmatpush1.bf16.msra.mxu0 %v587
      %653 = vmatprep.subr.bf16.mxu0 %v590
      %654 = vmatpush1.bf16.msra.mxu0 %v589
      %655 = vmatprep.subr.bf16.mxu0 %v592
      %656 = vmatpush1.bf16.msra.mxu0 %v591
      %657 = vmatprep.subr.bf16.mxu0 %v594
      %658 = vmatpush1.bf16.msra.mxu0 %v593
      %659 = vmatprep.subr.bf16.mxu0 %v596
      %660 = vmatpush1.bf16.msra.mxu0 %v595
      %661 = vmatprep.subr.bf16.mxu0 %v598
      %662 = vmatpush1.bf16.msra.mxu0 %v597
      %663 = vmatprep.subr.bf16.mxu0 %v600
      %664 = vmatpush1.bf16.msra.mxu0 %v599
      %665 = vmatprep.subr.bf16.mxu0 %v602
      %666 = vmatpush1.bf16.msra.mxu0 %v601
      %667 = vmatprep.subr.bf16.mxu0 %v604
      %668 = vmatpush1.bf16.msra.mxu0 %v603
      %669 = vmatprep.subr.bf16.mxu0 %v606
      %670 = vmatpush1.bf16.msra.mxu0 %v605
      %671 = vmatprep.subr.bf16.mxu0 %v608
      %672 = vmatpush1.bf16.msra.mxu0 %v607
      %673 = vmatprep.subr.bf16.mxu0 %v610
      %674 = vmatpush1.bf16.msra.mxu0 %v609
      %675 = vmatprep.subr.bf16.mxu0 %v612
      %676 = vmatpush1.bf16.msra.mxu0 %v611
      %677 = vmatprep.subr.bf16.mxu0 %v614
      %678 = vmatpush1.bf16.msra.mxu0 %v613
      %679 = vmatprep.mubr.bf16.mxu0 %v484
      %680 = vmatmul.mubr.bf16.gmra.mrb[0].mxu0 %v483
      %v681 = vpop.f32.mrb[0].mxu0
      %v682 = vadd.f32 %v459, %v681
      %v683 = vpop.f32.mrb[0].mxu0
      %v684 = vadd.f32 %v461, %v683
      %v685 = vpop.f32.mrb[0].mxu0
      %v686 = vadd.f32 %v463, %v685
      %v687 = vpop.f32.mrb[0].mxu0
      %v688 = vadd.f32 %v465, %v687
      %689 = vmatprep.mubr.bf16.mxu0 %v257
      %690 = vmatmul.mubr.bf16.gmra.mrb[0].mxu0 %v256
      %v691 = vpop.f32.mrb[0].mxu0
      %v692 = vadd.f32 %v469, %v691
      %v693 = vpop.f32.mrb[0].mxu0
      %v694 = vadd.f32 %v471, %v693
      %v695 = vpop.f32.mrb[0].mxu0
      %v696 = vadd.f32 %v473, %v695
      %v697 = vpop.f32.mrb[0].mxu0
      %v698 = vadd.f32 %v475, %v697
      %699 = vdwg.mxu0
      %s700 = scalar_lea.vmem %s1, 512
      %v701 = vld [vmem:[%s700] sm:$0xff]
      %v702 = vld [vmem:[%s700 + $0x8] sm:$0xff]
      %v703 = vld [vmem:[%s700 + $0x10] sm:$0xff]
      %v704 = vld [vmem:[%s700 + $0x18] sm:$0xff]
      %v705 = vld [vmem:[%s700 + $0x20] sm:$0xff]
      %v706 = vld [vmem:[%s700 + $0x28] sm:$0xff]
      %v707 = vld [vmem:[%s700 + $0x30] sm:$0xff]
      %v708 = vld [vmem:[%s700 + $0x38] sm:$0xff]
      %v709 = vld [vmem:[%s700 + $0x40] sm:$0xff]
      %v710 = vld [vmem:[%s700 + $0x48] sm:$0xff]
      %v711 = vld [vmem:[%s700 + $0x50] sm:$0xff]
      %v712 = vld [vmem:[%s700 + $0x58] sm:$0xff]
      %v713 = vld [vmem:[%s700 + $0x60] sm:$0xff]
      %v714 = vld [vmem:[%s700 + $0x68] sm:$0xff]
      %v715 = vld [vmem:[%s700 + $0x70] sm:$0xff]
      %v716 = vld [vmem:[%s700 + $0x78] sm:$0xff]
      %v717 = vld [vmem:[%s700 + $0x80] sm:$0xff]
      %v718 = vld [vmem:[%s700 + $0x88] sm:$0xff]
      %v719 = vld [vmem:[%s700 + $0x90] sm:$0xff]
      %v720 = vld [vmem:[%s700 + $0x98] sm:$0xff]
      %v721 = vld [vmem:[%s700 + $0xa0] sm:$0xff]
      %v722 = vld [vmem:[%s700 + $0xa8] sm:$0xff]
      %v723 = vld [vmem:[%s700 + $0xb0] sm:$0xff]
      %v724 = vld [vmem:[%s700 + $0xb8] sm:$0xff]
      %v725 = vld [vmem:[%s700 + $0xc0] sm:$0xff]
      %v726 = vld [vmem:[%s700 + $0xc8] sm:$0xff]
      %v727 = vld [vmem:[%s700 + $0xd0] sm:$0xff]
      %v728 = vld [vmem:[%s700 + $0xd8] sm:$0xff]
      %v729 = vld [vmem:[%s700 + $0xe0] sm:$0xff]
      %v730 = vld [vmem:[%s700 + $0xe8] sm:$0xff]
      %v731 = vld [vmem:[%s700 + $0xf0] sm:$0xff]
      %v732 = vld [vmem:[%s700 + $0xf8] sm:$0xff]
      %v735 = vunpack.c.l.b16 %v177
      %v736 = vunpack.c.h.b16 %v177
      %v737 = vunpack.c.l.b16 %v178
      %v738 = vunpack.c.h.b16 %v178
      %v739 = vpack.c.b16 %v737, %v735
      %v740 = vpack.c.b16 %v738, %v736
      %v775 = vunpack.c.l.b16 %v701
      %v776 = vunpack.c.h.b16 %v701
      %v777 = vunpack.c.l.b16 %v702
      %v778 = vunpack.c.h.b16 %v702
      %v779 = vunpack.c.l.b16 %v703
      %v780 = vunpack.c.h.b16 %v703
      %v781 = vunpack.c.l.b16 %v704
      %v782 = vunpack.c.h.b16 %v704
      %v783 = vunpack.c.l.b16 %v705
      %v784 = vunpack.c.h.b16 %v705
      %v785 = vunpack.c.l.b16 %v706
      %v786 = vunpack.c.h.b16 %v706
      %v787 = vunpack.c.l.b16 %v707
      %v788 = vunpack.c.h.b16 %v707
      %v789 = vunpack.c.l.b16 %v708
      %v790 = vunpack.c.h.b16 %v708
      %v791 = vunpack.c.l.b16 %v709
      %v792 = vunpack.c.h.b16 %v709
      %v793 = vunpack.c.l.b16 %v710
      %v794 = vunpack.c.h.b16 %v710
      %v795 = vunpack.c.l.b16 %v711
      %v796 = vunpack.c.h.b16 %v711
      %v797 = vunpack.c.l.b16 %v712
      %v798 = vunpack.c.h.b16 %v712
      %v799 = vunpack.c.l.b16 %v713
      %v800 = vunpack.c.h.b16 %v713
      %v801 = vunpack.c.l.b16 %v714
      %v802 = vunpack.c.h.b16 %v714
      %v803 = vunpack.c.l.b16 %v715
      %v804 = vunpack.c.h.b16 %v715
      %v805 = vunpack.c.l.b16 %v716
      %v806 = vunpack.c.h.b16 %v716
      %v807 = vunpack.c.l.b16 %v717
      %v808 = vunpack.c.h.b16 %v717
      %v809 = vunpack.c.l.b16 %v718
      %v810 = vunpack.c.h.b16 %v718
      %v811 = vunpack.c.l.b16 %v719
      %v812 = vunpack.c.h.b16 %v719
      %v813 = vunpack.c.l.b16 %v720
      %v814 = vunpack.c.h.b16 %v720
      %v815 = vunpack.c.l.b16 %v721
      %v816 = vunpack.c.h.b16 %v721
      %v817 = vunpack.c.l.b16 %v722
      %v818 = vunpack.c.h.b16 %v722
      %v819 = vunpack.c.l.b16 %v723
      %v820 = vunpack.c.h.b16 %v723
      %v821 = vunpack.c.l.b16 %v724
      %v822 = vunpack.c.h.b16 %v724
      %v823 = vunpack.c.l.b16 %v725
      %v824 = vunpack.c.h.b16 %v725
      %v825 = vunpack.c.l.b16 %v726
      %v826 = vunpack.c.h.b16 %v726
      %v827 = vunpack.c.l.b16 %v727
      %v828 = vunpack.c.h.b16 %v727
      %v829 = vunpack.c.l.b16 %v728
      %v830 = vunpack.c.h.b16 %v728
      %v831 = vunpack.c.l.b16 %v729
      %v832 = vunpack.c.h.b16 %v729
      %v833 = vunpack.c.l.b16 %v730
      %v834 = vunpack.c.h.b16 %v730
      %v835 = vunpack.c.l.b16 %v731
      %v836 = vunpack.c.h.b16 %v731
      %v837 = vunpack.c.l.b16 %v732
      %v838 = vunpack.c.h.b16 %v732
      %v839 = vpack.c.b16 %v777, %v775
      %v840 = vpack.c.b16 %v778, %v776
      %v841 = vpack.c.b16 %v781, %v779
      %v842 = vpack.c.b16 %v782, %v780
      %v843 = vpack.c.b16 %v785, %v783
      %v844 = vpack.c.b16 %v786, %v784
      %v845 = vpack.c.b16 %v789, %v787
      %v846 = vpack.c.b16 %v790, %v788
      %v847 = vpack.c.b16 %v793, %v791
      %v848 = vpack.c.b16 %v794, %v792
      %v849 = vpack.c.b16 %v797, %v795
      %v850 = vpack.c.b16 %v798, %v796
      %v851 = vpack.c.b16 %v801, %v799
      %v852 = vpack.c.b16 %v802, %v800
      %v853 = vpack.c.b16 %v805, %v803
      %v854 = vpack.c.b16 %v806, %v804
      %v855 = vpack.c.b16 %v809, %v807
      %v856 = vpack.c.b16 %v810, %v808
      %v857 = vpack.c.b16 %v813, %v811
      %v858 = vpack.c.b16 %v814, %v812
      %v859 = vpack.c.b16 %v817, %v815
      %v860 = vpack.c.b16 %v818, %v816
      %v861 = vpack.c.b16 %v821, %v819
      %v862 = vpack.c.b16 %v822, %v820
      %v863 = vpack.c.b16 %v825, %v823
      %v864 = vpack.c.b16 %v826, %v824
      %v865 = vpack.c.b16 %v829, %v827
      %v866 = vpack.c.b16 %v830, %v828
      %v867 = vpack.c.b16 %v833, %v831
      %v868 = vpack.c.b16 %v834, %v832
      %v869 = vpack.c.b16 %v837, %v835
      %v870 = vpack.c.b16 %v838, %v836
      %903 = vmatprep.subr.bf16.mxu0 %v840
      %904 = vmatpush1.bf16.msra.mxu0 %v839
      %905 = vmatprep.subr.bf16.mxu0 %v842
      %906 = vmatpush1.bf16.msra.mxu0 %v841
      %907 = vmatprep.subr.bf16.mxu0 %v844
      %908 = vmatpush1.bf16.msra.mxu0 %v843
      %909 = vmatprep.subr.bf16.mxu0 %v846
      %910 = vmatpush1.bf16.msra.mxu0 %v845
      %911 = vmatprep.subr.bf16.mxu0 %v848
      %912 = vmatpush1.bf16.msra.mxu0 %v847
      %913 = vmatprep.subr.bf16.mxu0 %v850
      %914 = vmatpush1.bf16.msra.mxu0 %v849
      %915 = vmatprep.subr.bf16.mxu0 %v852
      %916 = vmatpush1.bf16.msra.mxu0 %v851
      %917 = vmatprep.subr.bf16.mxu0 %v854
      %918 = vmatpush1.bf16.msra.mxu0 %v853
      %919 = vmatprep.subr.bf16.mxu0 %v856
      %920 = vmatpush1.bf16.msra.mxu0 %v855
      %921 = vmatprep.subr.bf16.mxu0 %v858
      %922 = vmatpush1.bf16.msra.mxu0 %v857
      %923 = vmatprep.subr.bf16.mxu0 %v860
      %924 = vmatpush1.bf16.msra.mxu0 %v859
      %925 = vmatprep.subr.bf16.mxu0 %v862
      %926 = vmatpush1.bf16.msra.mxu0 %v861
      %927 = vmatprep.subr.bf16.mxu0 %v864
      %928 = vmatpush1.bf16.msra.mxu0 %v863
      %929 = vmatprep.subr.bf16.mxu0 %v866
      %930 = vmatpush1.bf16.msra.mxu0 %v865
      %931 = vmatprep.subr.bf16.mxu0 %v868
      %932 = vmatpush1.bf16.msra.mxu0 %v867
      %933 = vmatprep.subr.bf16.mxu0 %v870
      %934 = vmatpush1.bf16.msra.mxu0 %v869
      %935 = vmatprep.mubr.bf16.mxu0 %v259
      %936 = vmatmul.mubr.bf16.gmra.mrb[0].mxu0 %v258
      %v937 = vpop.f32.mrb[0].mxu0
      %v938 = vadd.f32 0.0, %v937
      %v939 = vpop.f32.mrb[0].mxu0
      %v940 = vadd.f32 0.0, %v939
      %v941 = vpop.f32.mrb[0].mxu0
      %v942 = vadd.f32 0.0, %v941
      %v943 = vpop.f32.mrb[0].mxu0
      %v944 = vadd.f32 0.0, %v943
      %945 = vmatprep.mubr.bf16.mxu0 %v740
      %946 = vmatmul.mubr.bf16.gmra.mrb[0].mxu0 %v739
      %v947 = vpop.f32.mrb[0].mxu0
      %v948 = vadd.f32 0.0, %v947
      %v949 = vpop.f32.mrb[0].mxu0
      %v950 = vadd.f32 0.0, %v949
      %v951 = vpop.f32.mrb[0].mxu0
      %v952 = vadd.f32 0.0, %v951
      %v953 = vpop.f32.mrb[0].mxu0
      %v954 = vadd.f32 0.0, %v953
      %955 = vdwg.mxu0
      %v956 = vadd.f32 %v682, %v938
      %v957 = vadd.f32 %v684, %v940
      %v958 = vadd.f32 %v686, %v942
      %v959 = vadd.f32 %v688, %v944
      %v960 = vadd.f32 %v692, %v948
      %v961 = vadd.f32 %v694, %v950
      %v962 = vadd.f32 %v696, %v952
      %v963 = vadd.f32 %v698, %v954
      %v964 = vmax.f32 %v956, %v960
      %v965 = vmax.f32 %v957, %v961
      %v966 = vmax.f32 %v958, %v962
      %v967 = vmax.f32 %v959, %v963
      %v968 = vmax.f32 %v964, %v965
      %v969 = vmax.f32 %v966, %v967
      %v970 = vld [vmem:[%s2] sm:$0x1]
      %v972 = vlaneseq
      %v973 = vshrl.u32 %v972, 7
      %v974 = vsub.s32 0, %v973
      %v975 = vrot.slane %v970, %v974
      %v977 = vadd.f32 %v968, %v975
      %v978 = vadd.f32 %v969, %v975
      %v979 = vmax.f32 %v977, 0.0
      %v980 = vmax.f32 %v978, 0.0
      %v981 = vpack.c.bf16 %v980, %v979
      %v983 = vunpack.c.l.b16 %v981
      %v984 = vunpack.c.h.b16 %v981
      %v985 = vpack.c.b16 %v983, %v983
      %v986 = vpack.c.b16 %v984, %v984
      %989 = vst [vmem:[%s170] sm:$0xf] %v985
      %990 = vst [vmem:[%s170 + $0x4] sm:$0xf] %v986
      %p991 = scmp.lt.s32.totalorder %s14, 1
      %s992 = scalar_select %p991, %s14, 1
      %s993 = smul.addr %s992, 2
      %s994 = smul.addr %s993, 4
      %s995 = scalar_lea.vmem %s3, %s994
      // Predicated region
      $region33: #{genre_classifier_forward.4} parent=31 // pred_check
        %p996 = pneg %p100
      $region34: #{genre_classifier_forward.4} parent=31 // pred_check_branch
        %998 = sbr.rel (%p996) target = $region36
      $region35: #{genre_classifier_forward.4} parent=31 // pred_region
        _
      $region36: #{genre_classifier_forward.4} parent=31 // pred_fallthru
        _
    $region32: #{genre_classifier_forward.4} parent=5 // pred_fallthru
      _
    %p999 = scmp.le.s32.totalorder 2, %s9
    // Predicated region
    $region37: #{genre_classifier_forward.4} parent=5 // pred_check
      %p1000 = pneg %p999
    $region38: #{genre_classifier_forward.4} parent=5 // pred_check_branch
      %1002 = sbr.rel (%p1000) target = $region40
    $region39: #{genre_classifier_forward.4} parent=5 // pred_region
      %s1003 = ssub.s32 %s9, 2
      // Predicated region
      $region41: #{genre_classifier_forward.4} parent=39 // pred_check
        %p1004 = pneg %p106
      $region42: #{genre_classifier_forward.4} parent=39 // pred_check_branch
        %1006 = sbr.rel (%p1004) target = $region44
      $region43: #{genre_classifier_forward.4} parent=39 // pred_region
        %p1007 = scmp.lt.s32.totalorder %s15, 1
        %s1008 = scalar_select %p1007, %s15, 1
        %s1009 = smul.addr %s1008, 2
        %s1010 = smul.addr %s1009, 4
        %s1011 = scalar_lea.vmem %s3, %s1010
      $region44: #{genre_classifier_forward.4} parent=39 // pred_fallthru
        _
    $region40: #{genre_classifier_forward.4} parent=5 // pred_fallthru
      _
  $region6: #{genre_classifier_forward.4} parent=0 // loop_footer
    %s13 = sadd.s32 1, %s9
  $region7: #{genre_classifier_forward.4} parent=0 // loop_footer_branch
    %8 = sbr.rel target = $region3
  $region8: #{genre_classifier_forward.4} parent=0 // loop_exit
    _

// kernel: genre_classifier_forward.5
$region0: #{genre_classifier_forward.5}
  #allocation0 [shape = 'u32[]', space=smem, size = 0x4, offset = 0x4, fixed_abs, tag = 'smem constant byte address 0x4 - core index']
  #allocation1 [shape = 'u32[144,128]{1,0:T(1,128)}', space=vmem, size = 0x12000, scoped, tag = 'internal scratch']
  #allocation2 [shape = 'f32[2,128]{1,0:T(2,128)}', space=vmem, size = 0x400, scoped, tag = 'scratch operand']
  %s0 = inlined_call_operand.vmem [shape: bf16[2,512], index: 0, kind: input, shape index: {}]
  %s1 = inlined_call_operand.vmem [shape: bf16[512,128], index: 1, kind: input, shape index: {}]
  %s2 = inlined_call_operand.vmem [shape: f32[1,128], index: 2, kind: input, shape index: {}]
  %s3 = inlined_call_operand.vmem [shape: bf16[128,128], index: 3, kind: input, shape index: {}]
  %s4 = inlined_call_operand.vmem [shape: f32[1,128], index: 4, kind: input, shape index: {}]
  %s5 = inlined_call_operand.hbm [shape: f32[2,128], index: 5, kind: output, shape index: {}]
  %s6 = sld [smem:[#allocation0]]
  $region38: #{genre_classifier_forward.5} parent=0
    _
  %s8 = ssub.s32 1, %s6
  %s9 = scalar_select 0, %s8, %s6
  $region1: #{genre_classifier_forward.5} parent=0
    #allocation3 [shape = 'u8[1024]{0}', space=vmem, size = 0x400, scoped, tag = 'output window, operand 0, single buffered']
    #allocation4 [shape = 's32[1]{0}', space=sflag, size = 0x4, scoped, tag = 'scoped memory for genre_classifier_forward.5']
    %10 = vsyncpa [#allocation4], 0
    // Predicated region
    $region2: #{genre_classifier_forward.5} parent=1 // pred_check
      _
    $region3: #{genre_classifier_forward.5} parent=1 // pred_check_branch
      %12 = sbr.rel (0) target = $region5
    $region4: #{genre_classifier_forward.5} parent=1 // pred_region
      _
    $region5: #{genre_classifier_forward.5} parent=1 // pred_fallthru
      _
    // Predicated region
    $region6: #{genre_classifier_forward.5} parent=1 // pred_check
      _
    $region7: #{genre_classifier_forward.5} parent=1 // pred_check_branch
      %14 = sbr.rel (0) target = $region9
    $region8: #{genre_classifier_forward.5} parent=1 // pred_region
      _
    $region9: #{genre_classifier_forward.5} parent=1 // pred_fallthru
      _
    // Predicated region
    $region10: #{genre_classifier_forward.5} parent=1 // pred_check
      _
    $region11: #{genre_classifier_forward.5} parent=1 // pred_check_branch
      %16 = sbr.rel (0) target = $region13
    $region12: #{genre_classifier_forward.5} parent=1 // pred_region
      _
    $region13: #{genre_classifier_forward.5} parent=1 // pred_fallthru
      _
    // Predicated region
    $region14: #{genre_classifier_forward.5} parent=1 // pred_check
      _
    $region15: #{genre_classifier_forward.5} parent=1 // pred_check_branch
      %18 = sbr.rel (0) target = $region17
    $region16: #{genre_classifier_forward.5} parent=1 // pred_region
      _
    $region17: #{genre_classifier_forward.5} parent=1 // pred_fallthru
      _
    // Predicated region
    $region18: #{genre_classifier_forward.5} parent=1 // pred_check
      _
    $region19: #{genre_classifier_forward.5} parent=1 // pred_check_branch
      %20 = sbr.rel (0) target = $region21
    $region20: #{genre_classifier_forward.5} parent=1 // pred_region
      _
    $region21: #{genre_classifier_forward.5} parent=1 // pred_fallthru
      _
    %p22 = scmp.eq.s32.totalorder 0, 0
    // Predicated region
    $region22: #{genre_classifier_forward.5} parent=1 // pred_check
      %p23 = pneg %p22
    $region23: #{genre_classifier_forward.5} parent=1 // pred_check_branch
      %25 = sbr.rel (%p23) target = $region25
    $region24: #{genre_classifier_forward.5} parent=1 // pred_region
      %26 = vst [vmem:[#allocation2] sm:$0x3] 0.0
    $region25: #{genre_classifier_forward.5} parent=1 // pred_fallthru
      _
    %v27 = vld [vmem:[#allocation2] sm:$0x3]
    %v28 = vld [vmem:[%s0] sm:$0xf]
    %v29 = vld [vmem:[%s1] sm:$0xf]
    %v30 = vld [vmem:[%s1 + $0x4] sm:$0xf]
    %v31 = vld [vmem:[%s1 + $0x8] sm:$0xf]
    %v32 = vld [vmem:[%s1 + $0xc] sm:$0xf]
    %v33 = vld [vmem:[%s1 + $0x10] sm:$0xf]
    %v34 = vld [vmem:[%s1 + $0x14] sm:$0xf]
    %v35 = vld [vmem:[%s1 + $0x18] sm:$0xf]
    %v36 = vld [vmem:[%s1 + $0x1c] sm:$0xf]
    %v37 = vld [vmem:[%s1 + $0x20] sm:$0xf]
    %v38 = vld [vmem:[%s1 + $0x24] sm:$0xf]
    %v39 = vld [vmem:[%s1 + $0x28] sm:$0xf]
    %v40 = vld [vmem:[%s1 + $0x2c] sm:$0xf]
    %v41 = vld [vmem:[%s1 + $0x30] sm:$0xf]
    %v42 = vld [vmem:[%s1 + $0x34] sm:$0xf]
    %v43 = vld [vmem:[%s1 + $0x38] sm:$0xf]
    %v44 = vld [vmem:[%s1 + $0x3c] sm:$0xf]
    %v45 = vld [vmem:[%s1 + $0x40] sm:$0xf]
    %v46 = vld [vmem:[%s1 + $0x44] sm:$0xf]
    %v47 = vld [vmem:[%s1 + $0x48] sm:$0xf]
    %v48 = vld [vmem:[%s1 + $0x4c] sm:$0xf]
    %v49 = vld [vmem:[%s1 + $0x50] sm:$0xf]
    %v50 = vld [vmem:[%s1 + $0x54] sm:$0xf]
    %v51 = vld [vmem:[%s1 + $0x58] sm:$0xf]
    %v52 = vld [vmem:[%s1 + $0x5c] sm:$0xf]
    %v53 = vld [vmem:[%s1 + $0x60] sm:$0xf]
    %v54 = vld [vmem:[%s1 + $0x64] sm:$0xf]
    %v55 = vld [vmem:[%s1 + $0x68] sm:$0xf]
    %v56 = vld [vmem:[%s1 + $0x6c] sm:$0xf]
    %v57 = vld [vmem:[%s1 + $0x70] sm:$0xf]
    %v58 = vld [vmem:[%s1 + $0x74] sm:$0xf]
    %v59 = vld [vmem:[%s1 + $0x78] sm:$0xf]
    %v60 = vld [vmem:[%s1 + $0x7c] sm:$0xf]
    %v61 = vld [vmem:[%s1 + $0x80] sm:$0xf]
    %v62 = vld [vmem:[%s1 + $0x84] sm:$0xf]
    %v63 = vld [vmem:[%s1 + $0x88] sm:$0xf]
    %v64 = vld [vmem:[%s1 + $0x8c] sm:$0xf]
    %v65 = vld [vmem:[%s1 + $0x90] sm:$0xf]
    %v66 = vld [vmem:[%s1 + $0x94] sm:$0xf]
    %v67 = vld [vmem:[%s1 + $0x98] sm:$0xf]
    %v68 = vld [vmem:[%s1 + $0x9c] sm:$0xf]
    %v69 = vld [vmem:[%s1 + $0xa0] sm:$0xf]
    %v70 = vld [vmem:[%s1 + $0xa4] sm:$0xf]
    %v71 = vld [vmem:[%s1 + $0xa8] sm:$0xf]
    %v72 = vld [vmem:[%s1 + $0xac] sm:$0xf]
    %v73 = vld [vmem:[%s1 + $0xb0] sm:$0xf]
    %v74 = vld [vmem:[%s1 + $0xb4] sm:$0xf]
    %v75 = vld [vmem:[%s1 + $0xb8] sm:$0xf]
    %v76 = vld [vmem:[%s1 + $0xbc] sm:$0xf]
    %v77 = vld [vmem:[%s1 + $0xc0] sm:$0xf]
    %v78 = vld [vmem:[%s1 + $0xc4] sm:$0xf]
    %v79 = vld [vmem:[%s1 + $0xc8] sm:$0xf]
    %v80 = vld [vmem:[%s1 + $0xcc] sm:$0xf]
    %v81 = vld [vmem:[%s1 + $0xd0] sm:$0xf]
    %v82 = vld [vmem:[%s1 + $0xd4] sm:$0xf]
    %v83 = vld [vmem:[%s1 + $0xd8] sm:$0xf]
    %v84 = vld [vmem:[%s1 + $0xdc] sm:$0xf]
    %v85 = vld [vmem:[%s1 + $0xe0] sm:$0xf]
    %v86 = vld [vmem:[%s1 + $0xe4] sm:$0xf]
    %v87 = vld [vmem:[%s1 + $0xe8] sm:$0xf]
    %v88 = vld [vmem:[%s1 + $0xec] sm:$0xf]
    %v89 = vld [vmem:[%s1 + $0xf0] sm:$0xf]
    %v90 = vld [vmem:[%s1 + $0xf4] sm:$0xf]
    %v91 = vld [vmem:[%s1 + $0xf8] sm:$0xf]
    %v92 = vld [vmem:[%s1 + $0xfc] sm:$0xf]
    %v95 = vunpack.c.l.s4 1966171168
    %v96 = vunpack.c.0.s8 %v95
    %v97 = vlaneseq
    %v98 = vshrl.u32 %v97, 7
    %v99 = vsub.s32 %v96, %v98
    %v100 = vrot.slane %v28, %v99
    %v101 = vcombine.high %v100, %v100
    %v103 = vunpack.c.l.s4 1966171168
    %v104 = vunpack.c.0.s8 %v103
    %v105 = vlaneseq
    %v106 = vshrl.u32 %v105, 7
    %v107 = vsub.s32 %v104, %v106
    %v108 = vrot.slane %v100, %v107
    %v110 = vunpack.c.l.s4 1966171168
    %v111 = vunpack.c.0.s8 %v110
    %v112 = vlaneseq
    %v113 = vshrl.u32 %v112, 7
    %v114 = vsub.s32 %v111, %v113
    %v115 = vrot.slane %v101, %v114
    %v116 = vcombine.high %v108, %v108
    %v117 = vcombine.high %v115, %v115
    %v186 = vunpack.c.l.b16 %v29
    %v187 = vunpack.c.l.b16 %v30
    %v188 = vunpack.c.l.b16 %v31
    %v189 = vunpack.c.l.b16 %v32
    %v190 = vunpack.c.l.b16 %v33
    %v191 = vunpack.c.l.b16 %v34
    %v192 = vunpack.c.l.b16 %v35
    %v193 = vunpack.c.l.b16 %v36
    %v194 = vunpack.c.l.b16 %v37
    %v195 = vunpack.c.l.b16 %v38
    %v196 = vunpack.c.l.b16 %v39
    %v197 = vunpack.c.l.b16 %v40
    %v198 = vunpack.c.l.b16 %v41
    %v199 = vunpack.c.l.b16 %v42
    %v200 = vunpack.c.l.b16 %v43
    %v201 = vunpack.c.l.b16 %v44
    %v202 = vunpack.c.l.b16 %v45
    %v203 = vunpack.c.l.b16 %v46
    %v204 = vunpack.c.l.b16 %v47
    %v205 = vunpack.c.l.b16 %v48
    %v206 = vunpack.c.l.b16 %v49
    %v207 = vunpack.c.l.b16 %v50
    %v208 = vunpack.c.l.b16 %v51
    %v209 = vunpack.c.l.b16 %v52
    %v210 = vunpack.c.l.b16 %v53
    %v211 = vunpack.c.l.b16 %v54
    %v212 = vunpack.c.l.b16 %v55
    %v213 = vunpack.c.l.b16 %v56
    %v214 = vunpack.c.l.b16 %v57
    %v215 = vunpack.c.l.b16 %v58
    %v216 = vunpack.c.l.b16 %v59
    %v217 = vunpack.c.l.b16 %v60
    %v218 = vunpack.c.l.b16 %v61
    %v219 = vunpack.c.l.b16 %v62
    %v220 = vunpack.c.l.b16 %v63
    %v221 = vunpack.c.l.b16 %v64
    %v222 = vunpack.c.l.b16 %v65
    %v223 = vunpack.c.l.b16 %v66
    %v224 = vunpack.c.l.b16 %v67
    %v225 = vunpack.c.l.b16 %v68
    %v226 = vunpack.c.l.b16 %v69
    %v227 = vunpack.c.l.b16 %v70
    %v228 = vunpack.c.l.b16 %v71
    %v229 = vunpack.c.l.b16 %v72
    %v230 = vunpack.c.l.b16 %v73
    %v231 = vunpack.c.l.b16 %v74
    %v232 = vunpack.c.l.b16 %v75
    %v233 = vunpack.c.l.b16 %v76
    %v234 = vunpack.c.l.b16 %v77
    %v235 = vunpack.c.l.b16 %v78
    %v236 = vunpack.c.l.b16 %v79
    %v237 = vunpack.c.l.b16 %v80
    %v238 = vunpack.c.l.b16 %v81
    %v239 = vunpack.c.l.b16 %v82
    %v240 = vunpack.c.l.b16 %v83
    %v241 = vunpack.c.l.b16 %v84
    %v242 = vunpack.c.l.b16 %v85
    %v243 = vunpack.c.l.b16 %v86
    %v244 = vunpack.c.l.b16 %v87
    %v245 = vunpack.c.l.b16 %v88
    %v246 = vunpack.c.l.b16 %v89
    %v247 = vunpack.c.l.b16 %v90
    %v248 = vunpack.c.l.b16 %v91
    %v249 = vunpack.c.l.b16 %v92
    %v250 = vpack.c.b16 %v187, %v186
    %v251 = vpack.c.b16 %v189, %v188
    %v252 = vpack.c.b16 %v191, %v190
    %v253 = vpack.c.b16 %v193, %v192
    %v254 = vpack.c.b16 %v195, %v194
    %v255 = vpack.c.b16 %v197, %v196
    %v256 = vpack.c.b16 %v199, %v198
    %v257 = vpack.c.b16 %v201, %v200
    %v258 = vpack.c.b16 %v203, %v202
    %v259 = vpack.c.b16 %v205, %v204
    %v260 = vpack.c.b16 %v207, %v206
    %v261 = vpack.c.b16 %v209, %v208
    %v262 = vpack.c.b16 %v211, %v210
    %v263 = vpack.c.b16 %v213, %v212
    %v264 = vpack.c.b16 %v215, %v214
    %v265 = vpack.c.b16 %v217, %v216
    %v266 = vpack.c.b16 %v219, %v218
    %v267 = vpack.c.b16 %v221, %v220
    %v268 = vpack.c.b16 %v223, %v222
    %v269 = vpack.c.b16 %v225, %v224
    %v270 = vpack.c.b16 %v227, %v226
    %v271 = vpack.c.b16 %v229, %v228
    %v272 = vpack.c.b16 %v231, %v230
    %v273 = vpack.c.b16 %v233, %v232
    %v274 = vpack.c.b16 %v235, %v234
    %v275 = vpack.c.b16 %v237, %v236
    %v276 = vpack.c.b16 %v239, %v238
    %v277 = vpack.c.b16 %v241, %v240
    %v278 = vpack.c.b16 %v243, %v242
    %v279 = vpack.c.b16 %v245, %v244
    %v280 = vpack.c.b16 %v247, %v246
    %v281 = vpack.c.b16 %v249, %v248
    %314 = vmatprep.subr.bf16.mxu0 0
    %315 = vmatpush1.bf16.msra.mxu0 %v250
    %316 = vmatprep.subr.bf16.mxu0 0
    %317 = vmatpush1.bf16.msra.mxu0 %v251
    %318 = vmatprep.subr.bf16.mxu0 0
    %319 = vmatpush1.bf16.msra.mxu0 %v252
    %320 = vmatprep.subr.bf16.mxu0 0
    %321 = vmatpush1.bf16.msra.mxu0 %v253
    %322 = vmatprep.subr.bf16.mxu0 0
    %323 = vmatpush1.bf16.msra.mxu0 %v254
    %324 = vmatprep.subr.bf16.mxu0 0
    %325 = vmatpush1.bf16.msra.mxu0 %v255
    %326 = vmatprep.subr.bf16.mxu0 0
    %327 = vmatpush1.bf16.msra.mxu0 %v256
    %328 = vmatprep.subr.bf16.mxu0 0
    %329 = vmatpush1.bf16.msra.mxu0 %v257
    %330 = vmatprep.subr.bf16.mxu0 0
    %331 = vmatpush1.bf16.msra.mxu0 %v258
    %332 = vmatprep.subr.bf16.mxu0 0
    %333 = vmatpush1.bf16.msra.mxu0 %v259
    %334 = vmatprep.subr.bf16.mxu0 0
    %335 = vmatpush1.bf16.msra.mxu0 %v260
    %336 = vmatprep.subr.bf16.mxu0 0
    %337 = vmatpush1.bf16.msra.mxu0 %v261
    %338 = vmatprep.subr.bf16.mxu0 0
    %339 = vmatpush1.bf16.msra.mxu0 %v262
    %340 = vmatprep.subr.bf16.mxu0 0
    %341 = vmatpush1.bf16.msra.mxu0 %v263
    %342 = vmatprep.subr.bf16.mxu0 0
    %343 = vmatpush1.bf16.msra.mxu0 %v264
    %344 = vmatprep.subr.bf16.mxu0 0
    %345 = vmatpush1.bf16.msra.mxu0 %v265
    %346 = vmatprep.mubr.bf16.mxu0 %v115
    %347 = vmatmul.mubr.bf16.gmra.mrb[0].mxu0 %v108
    %v348 = vpop.f32.mrb[0].mxu0
    %v349 = vadd.f32 0.0, %v348
    %v350 = vpop.f32.mrb[0].mxu0
    %v351 = vpop.f32.mrb[0].mxu0
    %v352 = vpop.f32.mrb[0].mxu0
    %353 = vdwg.mxu0
    %354 = vmatprep.subr.bf16.mxu0 0
    %355 = vmatpush1.bf16.msra.mxu0 %v266
    %356 = vmatprep.subr.bf16.mxu0 0
    %357 = vmatpush1.bf16.msra.mxu0 %v267
    %358 = vmatprep.subr.bf16.mxu0 0
    %359 = vmatpush1.bf16.msra.mxu0 %v268
    %360 = vmatprep.subr.bf16.mxu0 0
    %361 = vmatpush1.bf16.msra.mxu0 %v269
    %362 = vmatprep.subr.bf16.mxu0 0
    %363 = vmatpush1.bf16.msra.mxu0 %v270
    %364 = vmatprep.subr.bf16.mxu0 0
    %365 = vmatpush1.bf16.msra.mxu0 %v271
    %366 = vmatprep.subr.bf16.mxu0 0
    %367 = vmatpush1.bf16.msra.mxu0 %v272
    %368 = vmatprep.subr.bf16.mxu0 0
    %369 = vmatpush1.bf16.msra.mxu0 %v273
    %370 = vmatprep.subr.bf16.mxu0 0
    %371 = vmatpush1.bf16.msra.mxu0 %v274
    %372 = vmatprep.subr.bf16.mxu0 0
    %373 = vmatpush1.bf16.msra.mxu0 %v275
    %374 = vmatprep.subr.bf16.mxu0 0
    %375 = vmatpush1.bf16.msra.mxu0 %v276
    %376 = vmatprep.subr.bf16.mxu0 0
    %377 = vmatpush1.bf16.msra.mxu0 %v277
    %378 = vmatprep.subr.bf16.mxu0 0
    %379 = vmatpush1.bf16.msra.mxu0 %v278
    %380 = vmatprep.subr.bf16.mxu0 0
    %381 = vmatpush1.bf16.msra.mxu0 %v279
    %382 = vmatprep.subr.bf16.mxu0 0
    %383 = vmatpush1.bf16.msra.mxu0 %v280
    %384 = vmatprep.subr.bf16.mxu0 0
    %385 = vmatpush1.bf16.msra.mxu0 %v281
    %386 = vmatprep.mubr.bf16.mxu0 %v117
    %387 = vmatmul.mubr.bf16.gmra.mrb[0].mxu0 %v116
    %v388 = vpop.f32.mrb[0].mxu0
    %v389 = vadd.f32 %v349, %v388
    %v390 = vpop.f32.mrb[0].mxu0
    %v391 = vpop.f32.mrb[0].mxu0
    %v392 = vpop.f32.mrb[0].mxu0
    %393 = vdwg.mxu0
    %v394 = vadd.f32 %v27, %v389
    %395 = vst [vmem:[#allocation2] sm:$0x3] %v394
    // Predicated region
    $region26: #{genre_classifier_forward.5} parent=1 // pred_check
      %p396 = pneg %p22
    $region27: #{genre_classifier_forward.5} parent=1 // pred_check_branch
      %398 = sbr.rel (%p396) target = $region29
    $region28: #{genre_classifier_forward.5} parent=1 // pred_region
      %v399 = vld [vmem:[#allocation2] sm:$0x3]
      %v400 = vld [vmem:[%s2] sm:$0x1]
      %v402 = vlaneseq
      %v403 = vshrl.u32 %v402, 7
      %v404 = vsub.s32 0, %v403
      %v405 = vrot.slane %v400, %v404
      %v407 = vadd.f32 %v399, %v405
      %v408 = vmax.f32 %v407, 0.0
      %v409 = vpack.c.bf16 %v408, %v408
      %v410 = vld [vmem:[%s3] sm:$0xf]
      %v411 = vld [vmem:[%s3 + $0x4] sm:$0xf]
      %v412 = vld [vmem:[%s3 + $0x8] sm:$0xf]
      %v413 = vld [vmem:[%s3 + $0xc] sm:$0xf]
      %v414 = vld [vmem:[%s3 + $0x10] sm:$0xf]
      %v415 = vld [vmem:[%s3 + $0x14] sm:$0xf]
      %v416 = vld [vmem:[%s3 + $0x18] sm:$0xf]
      %v417 = vld [vmem:[%s3 + $0x1c] sm:$0xf]
      %v418 = vld [vmem:[%s3 + $0x20] sm:$0xf]
      %v419 = vld [vmem:[%s3 + $0x24] sm:$0xf]
      %v420 = vld [vmem:[%s3 + $0x28] sm:$0xf]
      %v421 = vld [vmem:[%s3 + $0x2c] sm:$0xf]
      %v422 = vld [vmem:[%s3 + $0x30] sm:$0xf]
      %v423 = vld [vmem:[%s3 + $0x34] sm:$0xf]
      %v424 = vld [vmem:[%s3 + $0x38] sm:$0xf]
      %v425 = vld [vmem:[%s3 + $0x3c] sm:$0xf]
      %v426 = vld [vmem:[%s4] sm:$0x1]
      %v428 = vlaneseq
      %v429 = vshrl.u32 %v428, 7
      %v430 = vsub.s32 0, %v429
      %v431 = vrot.slane %v426, %v430
      %v449 = vunpack.c.l.b16 %v410
      %v450 = vunpack.c.l.b16 %v411
      %v451 = vunpack.c.l.b16 %v412
      %v452 = vunpack.c.l.b16 %v413
      %v453 = vunpack.c.l.b16 %v414
      %v454 = vunpack.c.l.b16 %v415
      %v455 = vunpack.c.l.b16 %v416
      %v456 = vunpack.c.l.b16 %v417
      %v457 = vunpack.c.l.b16 %v418
      %v458 = vunpack.c.l.b16 %v419
      %v459 = vunpack.c.l.b16 %v420
      %v460 = vunpack.c.l.b16 %v421
      %v461 = vunpack.c.l.b16 %v422
      %v462 = vunpack.c.l.b16 %v423
      %v463 = vunpack.c.l.b16 %v424
      %v464 = vunpack.c.l.b16 %v425
      %v465 = vpack.c.b16 %v450, %v449
      %v466 = vpack.c.b16 %v452, %v451
      %v467 = vpack.c.b16 %v454, %v453
      %v468 = vpack.c.b16 %v456, %v455
      %v469 = vpack.c.b16 %v458, %v457
      %v470 = vpack.c.b16 %v460, %v459
      %v471 = vpack.c.b16 %v462, %v461
      %v472 = vpack.c.b16 %v464, %v463
      %481 = vmatprep.subr.bf16.mxu0 0
      %482 = vmatpush1.bf16.msra.mxu0 %v465
      %483 = vmatprep.subr.bf16.mxu0 0
      %484 = vmatpush1.bf16.msra.mxu0 %v466
      %485 = vmatprep.subr.bf16.mxu0 0
      %486 = vmatpush1.bf16.msra.mxu0 %v467
      %487 = vmatprep.subr.bf16.mxu0 0
      %488 = vmatpush1.bf16.msra.mxu0 %v468
      %489 = vmatprep.subr.bf16.mxu0 0
      %490 = vmatpush1.bf16.msra.mxu0 %v469
      %491 = vmatprep.subr.bf16.mxu0 0
      %492 = vmatpush1.bf16.msra.mxu0 %v470
      %493 = vmatprep.subr.bf16.mxu0 0
      %494 = vmatpush1.bf16.msra.mxu0 %v471
      %495 = vmatprep.subr.bf16.mxu0 0
      %496 = vmatpush1.bf16.msra.mxu0 %v472
      %497 = vmatprep.subr.bf16.mxu0 0
      %498 = vmatpush1.bf16.msra.mxu0 0
      %499 = vmatprep.subr.bf16.mxu0 0
      %500 = vmatpush1.bf16.msra.mxu0 0
      %501 = vmatprep.subr.bf16.mxu0 0
      %502 = vmatpush1.bf16.msra.mxu0 0
      %503 = vmatprep.subr.bf16.mxu0 0
      %504 = vmatpush1.bf16.msra.mxu0 0
      %505 = vmatprep.subr.bf16.mxu0 0
      %506 = vmatpush1.bf16.msra.mxu0 0
      %507 = vmatprep.subr.bf16.mxu0 0
      %508 = vmatpush1.bf16.msra.mxu0 0
      %509 = vmatprep.subr.bf16.mxu0 0
      %510 = vmatpush1.bf16.msra.mxu0 0
      %511 = vmatprep.subr.bf16.mxu0 0
      %512 = vmatpush1.bf16.msra.mxu0 0
      %513 = vmatprep.mubr.bf16.mxu0 0
      %514 = vmatmul.mubr.bf16.gmra.mrb[0].mxu0 %v409
      %v515 = vpop.f32.mrb[0].mxu0
      %v516 = vadd.f32 %v431, %v515
      %v517 = vpop.f32.mrb[0].mxu0
      %v518 = vpop.f32.mrb[0].mxu0
      %v519 = vpop.f32.mrb[0].mxu0
      %520 = vdwg.mxu0
      %521 = vst [vmem:[#allocation3] sm:$0x3] %v516
    $region29: #{genre_classifier_forward.5} parent=1 // pred_fallthru
      _
    // Predicated region
    $region30: #{genre_classifier_forward.5} parent=1 // pred_check
      _
    $region31: #{genre_classifier_forward.5} parent=1 // pred_check_branch
      %523 = sbr.rel (0) target = $region33
    $region32: #{genre_classifier_forward.5} parent=1 // pred_region
      %s525 = ssub.s32 32, 32
      %526 = vsyncadd [#allocation4], %s525
      %s528 = sshll.u32 [#allocation3], 4
      %s529 = int_to_ptr.vmem [resolvable:$true] %s528
      %531 = dma.vmem_to_hbm [thread:$0]  %s529, 32, %s5, [#allocation4]
    $region33: #{genre_classifier_forward.5} parent=1 // pred_fallthru
      _
    // Predicated region
    $region34: #{genre_classifier_forward.5} parent=1 // pred_check
      _
    $region35: #{genre_classifier_forward.5} parent=1 // pred_check_branch
      %533 = sbr.rel (0) target = $region37
    $region36: #{genre_classifier_forward.5} parent=1 // pred_region
      %534 = dma.done [#allocation4], 32
    $region37: #{genre_classifier_forward.5} parent=1 // pred_fallthru
      _
    %535 = vsyncpa [#allocation4], 1

</llo_original>
